<compile_context>
chip_gen: v5e
topology: v5e:2x2
jax: 0.10.0
libtpu: 0.0.40
codegen_flags: <defaults>
</compile_context>

<pallas_src>
import functools

import jax
import jax.numpy as jnp
from jax import lax
from jax.experimental import pallas as pl
from jax.experimental.pallas import tpu as pltpu

_LANES = 128
_DEFAULT_TILE_N = 512


def _round_up(a, b):
    return ((a + b - 1) // b) * b


# ----------------------------- kernels ---------------------------------------
def _gated_attn_kernel_c1(x_ref, wab_ref, bab_ref, wc_ref, bc_ref, out_ref, *,
                          d_pad, compute_dtype):
    """n_classes == 1: fused (L, 2*Dp) matmul, gate, project to a (1, tn) row."""
    xv = x_ref[...].astype(compute_dtype)                        # cast in VMEM
    h = jnp.dot(xv, wab_ref[...], preferred_element_type=jnp.float32)
    h = h + bab_ref[...]                                         # (tn, 2*Dp) f32
    a = jnp.tanh(h[:, :d_pad])                                   # attention_a
    g = jax.nn.sigmoid(h[:, d_pad:])                             # attention_b
    gated = (a * g).astype(compute_dtype)                        # (tn, Dp) bf16
    # attention_c with one class: (1, Dp) . (tn, Dp)^T -> (1, tn). Result is a
    # lane-dense row (no 128-lane output slab, no explicit transpose needed).
    a_row = lax.dot_general(wc_ref[...], gated,
                            dimension_numbers=(((1,), (1,)), ((), ())),
                            preferred_element_type=jnp.float32)   # (1, tn)
    out_ref[...] = (a_row + bc_ref[0]).astype(out_ref.dtype)


def _gated_attn_kernel_mm(x_ref, wab_ref, bab_ref, wc_ref, bc_ref, out_ref, *,
                          d_pad, compute_dtype):
    """General n_classes: fused (L, 2*Dp) matmul + bf16 (Dp, C_pad) matmul."""
    xv = x_ref[...].astype(compute_dtype)
    h = jnp.dot(xv, wab_ref[...], preferred_element_type=jnp.float32)
    h = h + bab_ref[...]                                         # (tn, 2*Dp) f32
    gated = (jnp.tanh(h[:, :d_pad]) *
             jax.nn.sigmoid(h[:, d_pad:])).astype(compute_dtype)  # (tn, Dp) bf16
    a_out = jnp.dot(gated, wc_ref[...], preferred_element_type=jnp.float32)
    out_ref[...] = (a_out + bc_ref[...]).astype(out_ref.dtype)


# ----------------------------- wrapper ----------------------------------------
def prepare_attn_net_gated_params(wa, ba, wb, bb, wc, bc, *,
                                  compute_dtype=jnp.bfloat16):
    """One-time weight fusion / padding / casting (do this at module init).

    wa, wb: (L, D) pre-transposed Linear weights; wc: (D, n_classes); biases 1-D.
    Each Wa/Wb half is padded to a 128-lane boundary so the in-kernel
    tanh/sigmoid split is lane-aligned (padded columns produce gated == 0).
    """
    L, D = wa.shape
    C = wc.shape[1]
    d_pad = _round_up(D, _LANES)

    wab = jnp.zeros((L, 2 * d_pad), compute_dtype)
    wab = wab.at[:, :D].set(wa.astype(compute_dtype))
    wab = wab.at[:, d_pad:d_pad + D].set(wb.astype(compute_dtype))
    bab = jnp.zeros((1, 2 * d_pad), jnp.float32)
    bab = bab.at[0, :D].set(ba.astype(jnp.float32))
    bab = bab.at[0, d_pad:d_pad + D].set(bb.astype(jnp.float32))

    params = dict(L=L, D=D, d_pad=d_pad, C=C, compute_dtype=compute_dtype,
                  wab=wab, bab=bab)
    if C == 1:
        wc_row = jnp.zeros((1, d_pad), compute_dtype).at[0, :D].set(
            wc[:, 0].astype(compute_dtype))
        params["wc"] = wc_row
        params["bc"] = bc.reshape(1).astype(jnp.float32)      # scalar in SMEM
        params["c_pad"] = None
    else:
        c_pad = _round_up(C, _LANES)
        wc_p = jnp.zeros((d_pad, c_pad), compute_dtype).at[:D, :C].set(
            wc.astype(compute_dtype))
        bc_p = jnp.zeros((1, c_pad), jnp.float32).at[0, :C].set(
            bc.astype(jnp.float32))
        params["wc"] = wc_p
        params["bc"] = bc_p
        params["c_pad"] = c_pad
    return params


def _pick_tile_n(N, tile_n):
    if tile_n is not None:
        return tile_n
    # Big row tiles for HBM efficiency, but keep >= 2 tiles when N allows so the
    # "parallel" grid axis can split across both TensorCores on 2-TC chips (v7x).
    return int(min(_DEFAULT_TILE_N, max(_LANES, _round_up(pl.cdiv(N, 2), _LANES))))


def _vmem_limit_bytes(tile_n, L, x_itemsize, d_pad, c_pad, out_itemsize):
    x_tile = 2 * tile_n * L * x_itemsize                 # double-buffered x tile
    w_fused = 2 * L * 2 * d_pad * 2 + 2 * 2 * d_pad * 4  # Wa|Wb bf16 + bias f32
    if c_pad is None:
        w_c = 2 * d_pad * 2
        out = 2 * tile_n * out_itemsize
    else:
        w_c = 2 * d_pad * c_pad * 2 + 2 * c_pad * 4
        out = 2 * tile_n * c_pad * out_itemsize
    tmp = tile_n * 2 * d_pad * 4 + 2 * tile_n * d_pad * 4  # h f32 + activations
    total = x_tile + w_fused + w_c + out + tmp
    return int(min(max(2 * total, 16 << 20), 48 << 20))   # 2x headroom, v7x-safe


def attn_net_gated_forward(x, params, *, tile_n=None):
    """Forward pass of Attn_Net_Gated; returns (A, x) like the PyTorch module."""
    N, L = x.shape
    assert L == params["L"], f"feature dim mismatch: {L} vs {params['L']}"
    d_pad = params["d_pad"]
    C = params["C"]
    c_pad = params["c_pad"]
    compute_dtype = params["compute_dtype"]
    out_dtype = x.dtype

    tile_n = _pick_tile_n(N, tile_n)
    n_tiles = pl.cdiv(N, tile_n)   # ragged tail handled by Pallas OOB masking

    compiler_params = pltpu.CompilerParams(
        dimension_semantics=("parallel",),
        vmem_limit_bytes=_vmem_limit_bytes(
            tile_n, L, x.dtype.itemsize, d_pad, c_pad, x.dtype.itemsize),
    )

    common_in_specs = [
        pl.BlockSpec((tile_n, L), lambda i: (i, 0)),      # x tile (native dtype)
        pl.BlockSpec((L, 2 * d_pad), lambda i: (0, 0)),   # Wa|Wb fused (bf16)
        pl.BlockSpec((1, 2 * d_pad), lambda i: (0, 0)),   # ba|bb fused (f32)
    ]

    if C == 1:
        kernel = functools.partial(_gated_attn_kernel_c1, d_pad=d_pad,
                                   compute_dtype=compute_dtype)
        out = pl.pallas_call(
            kernel,
            out_shape=jax.ShapeDtypeStruct((1, n_tiles * tile_n), out_dtype),
            grid_spec=pltpu.PrefetchScalarGridSpec(
                num_scalar_prefetch=0,
                grid=(n_tiles,),
                in_specs=common_in_specs + [
                    pl.BlockSpec((1, d_pad), lambda i: (0, 0)),          # wc row
                    pl.BlockSpec(memory_space=pltpu.MemorySpace.SMEM),   # bc scalar
                ],
                out_specs=pl.BlockSpec((1, tile_n), lambda i: (0, i)),
            ),
            compiler_params=compiler_params,
        )(x, params["wab"], params["bab"], params["wc"], params["bc"])
        A = out[0, :N].reshape(N, 1)
    else:
        kernel = functools.partial(_gated_attn_kernel_mm, d_pad=d_pad,
                                   compute_dtype=compute_dtype)
        out = pl.pallas_call(
            kernel,
            out_shape=jax.ShapeDtypeStruct((N, c_pad), out_dtype),
            grid_spec=pltpu.PrefetchScalarGridSpec(
                num_scalar_prefetch=0,
                grid=(n_tiles,),
                in_specs=common_in_specs + [
                    pl.BlockSpec((d_pad, c_pad), lambda i: (0, 0)),      # Wc (bf16)
                    pl.BlockSpec((1, c_pad), lambda i: (0, 0)),          # bc (f32)
                ],
                out_specs=pl.BlockSpec((tile_n, c_pad), lambda i: (i, 0)),
            ),
            compiler_params=compiler_params,
        )(x, params["wab"], params["bab"], params["wc"], params["bc"])
        A = out[:, :C]

    return A, x


def attn_net_gated(x, wa, ba, wb, bb, wc, bc, *, tile_n=None,
                   compute_dtype=jnp.bfloat16):
    """Convenience one-shot wrapper (prefer preparing params once at init)."""
    params = prepare_attn_net_gated_params(wa, ba, wb, bb, wc, bc,
                                           compute_dtype=compute_dtype)
    return attn_net_gated_forward(x, params, tile_n=tile_n)


# ----------------------------- references -------------------------------------
def _reference_f32(x, wa, ba, wb, bb, wc, bc):
    a = jnp.tanh(x @ wa + ba)
    b = jax.nn.sigmoid(x @ wb + bb)
    return (a * b) @ wc + bc


def _reference_matched(x, wa, ba, wb, bb, wc, bc, compute_dtype=jnp.bfloat16):
    """Reference using the same bf16 operand casts as the kernel."""
    D = wa.shape[1]
    wab = jnp.concatenate([wa, wb], axis=1).astype(compute_dtype)
    bab = jnp.concatenate([ba, bb]).astype(jnp.float32)
    h = jnp.dot(x.astype(compute_dtype), wab,
                preferred_element_type=jnp.float32) + bab
    gated = (jnp.tanh(h[:, :D]) * jax.nn.sigmoid(h[:, D:])).astype(compute_dtype)
    return jnp.dot(gated, wc.astype(compute_dtype),
                   preferred_element_type=jnp.float32) + bc.astype(jnp.float32)


if __name__ == "__main__":
    root = jax.random.PRNGKey(0)
    kx, kwa, kba, kwb, kbb, kwc, kbc, kx2, kwc2, kbc2, k3 = jax.random.split(root, 11)

    # ---- Case 1: module default n_classes=1 (scaled-down L, D) --------------
    N, L, D, C = 512, 256, 128, 1
    x = jax.random.normal(kx, (N, L), dtype=jnp.float32)
    wa = jax.random.normal(kwa, (L, D), dtype=jnp.float32) * (1.0 / jnp.sqrt(L))
    ba = jax.random.normal(kba, (D,), dtype=jnp.float32) * 0.01
    wb = jax.random.normal(kwb, (L, D), dtype=jnp.float32) * (1.0 / jnp.sqrt(L))
    bb = jax.random.normal(kbb, (D,), dtype=jnp.float32) * 0.01
    wc = jax.random.normal(kwc, (D, C), dtype=jnp.float32) * (1.0 / jnp.sqrt(D))
    bc = jax.random.normal(kbc, (C,), dtype=jnp.float32) * 0.01

    params1 = prepare_attn_net_gated_params(wa, ba, wb, bb, wc, bc)  # once, at init
    A, x_out = attn_net_gated_forward(x, params1)
    jax.block_until_ready((A, x_out))

    A_match = _reference_matched(x, wa, ba, wb, bb, wc, bc)
    A_f32 = _reference_f32(x, wa, ba, wb, bb, wc, bc)
    assert A.shape == (N, C)
    assert x_out.shape == (N, L)
    assert jnp.allclose(A, A_match, atol=2e-3, rtol=2e-3), "mismatch vs matched ref"
    assert jnp.allclose(A, A_f32, atol=5e-2, rtol=5e-2), "mismatch vs f32 ref"
    assert jnp.array_equal(x_out, x), "passthrough x mismatch"

    # ---- Case 2: n_classes>1 and ragged N (pad-free tail + C>1 matmul path) --
    N2, C2 = 200, 3
    x2 = jax.random.normal(kx2, (N2, L), dtype=jnp.float32)
    wc2 = jax.random.normal(kwc2, (D, C2), dtype=jnp.float32) * (1.0 / jnp.sqrt(D))
    bc2 = jax.random.normal(kbc2, (C2,), dtype=jnp.float32) * 0.01

    params2 = prepare_attn_net_gated_params(wa, ba, wb, bb, wc2, bc2)
    A2, x2_out = attn_net_gated_forward(x2, params2)
    jax.block_until_ready((A2, x2_out))
    A2_match = _reference_matched(x2, wa, ba, wb, bb, wc2, bc2)
    assert A2.shape == (N2, C2)
    assert jnp.allclose(A2, A2_match, atol=2e-3, rtol=2e-3), "mismatch (C>1 path)"
    assert jnp.array_equal(x2_out, x2), "passthrough x mismatch (C>1 path)"

    # ---- Case 3: non-128-aligned hidden dim D (exercises lane padding) -------
    N3, D3, C3 = 100, 80, 1
    k3a, k3b, k3c, k3d, k3e, k3f, k3x = jax.random.split(k3, 7)
    wa3 = jax.random.normal(k3a, (L, D3), dtype=jnp.float32) * (1.0 / jnp.sqrt(L))
    ba3 = jax.random.normal(k3b, (D3,), dtype=jnp.float32) * 0.01
    wb3 = jax.random.normal(k3c, (L, D3), dtype=jnp.float32) * (1.0 / jnp.sqrt(L))
    bb3 = jax.random.normal(k3d, (D3,), dtype=jnp.float32) * 0.01
    wc3 = jax.random.normal(k3e, (D3, C3), dtype=jnp.float32) * (1.0 / jnp.sqrt(D3))
    bc3 = jax.random.normal(k3f, (C3,), dtype=jnp.float32) * 0.01
    x3 = jax.random.normal(k3x, (N3, L), dtype=jnp.float32)

    A3, x3_out = attn_net_gated(x3, wa3, ba3, wb3, bb3, wc3, bc3)
    jax.block_until_ready((A3, x3_out))
    A3_match = _reference_matched(x3, wa3, ba3, wb3, bb3, wc3, bc3)
    assert A3.shape == (N3, C3)
    assert jnp.allclose(A3, A3_match, atol=2e-3, rtol=2e-3), "mismatch (unaligned D)"
    assert jnp.array_equal(x3_out, x3), "passthrough x mismatch (unaligned D)"

    # TODO(synk): nn.Dropout(p=0.25) branch (dropout=True) is not implemented;
    # the reference module is used with dropout=False in this forward pass.

    print("KERNEL_OK")
</pallas_src>

<mosaic_0001>
module attributes {stable_mosaic.version = 11 : i64} {
  func.func @_gated_attn_kernel_c1(%arg0: i32, %arg1: memref<256x256xf32, #tpu.memory_space<vmem>>, %arg2: memref<256x256xbf16, #tpu.memory_space<vmem>>, %arg3: memref<1x256xf32, #tpu.memory_space<vmem>>, %arg4: memref<1x128xbf16, #tpu.memory_space<vmem>>, %arg5: memref<1xf32, #tpu.memory_space<smem>>, %arg6: memref<1x256xf32, #tpu.memory_space<vmem>>) attributes {dimension_semantics = [#tpu.dimension_semantics<parallel>], iteration_bounds = array<i64: 2>, scalar_prefetch = 0 : i64, scratch_operands = 0 : i64, tpu.core_type = #tpu.core_type<tc>, window_params = [{transform_indices = @transform_0, window_bounds = array<i64: 256, 256>}, {pipeline_mode = #tpu.pipeline_mode<synchronous>, transform_indices = @transform_1, window_bounds = array<i64: 256, 256>}, {pipeline_mode = #tpu.pipeline_mode<synchronous>, transform_indices = @transform_2, window_bounds = array<i64: 1, 256>}, {pipeline_mode = #tpu.pipeline_mode<synchronous>, transform_indices = @transform_3, window_bounds = array<i64: 1, 128>}, {transform_indices = @transform_4, window_bounds = array<i64: 1>}, {transform_indices = @transform_5, window_bounds = array<i64: 1, 256>}]} {
    %c0 = arith.constant 0 : index
    %c0_0 = arith.constant 0 : index
    %0 = vector.load %arg1[%c0, %c0_0] : memref<256x256xf32, #tpu.memory_space<vmem>>, vector<256x256xf32>
    %1 = arith.truncf %0 : vector<256x256xf32> to vector<256x256xbf16>
    %c0_1 = arith.constant 0 : index
    %c0_2 = arith.constant 0 : index
    %2 = vector.load %arg2[%c0_1, %c0_2] : memref<256x256xbf16, #tpu.memory_space<vmem>>, vector<256x256xbf16>
    %cst = arith.constant dense<0.000000e+00> : vector<256x256xf32>
    %3 = tpu.matmul %1, %2, %cst {dimension_numbers = #tpu.dot_dimension_numbers<[1], [0], [0], [1], [0, 0, 1, 1], [], []>} : vector<256x256xbf16>, vector<256x256xbf16>, vector<256x256xf32> -> vector<256x256xf32>
    %c0_3 = arith.constant 0 : index
    %c0_4 = arith.constant 0 : index
    %4 = vector.load %arg3[%c0_3, %c0_4] : memref<1x256xf32, #tpu.memory_space<vmem>>, vector<1x256xf32>
    %5 = vector.broadcast %4 : vector<1x256xf32> to vector<256x256xf32>
    %6 = arith.addf %3, %5 : vector<256x256xf32>
    %7 = vector.extract_strided_slice %6 {offsets = [0, 0], sizes = [256, 128], strides = [1, 1]} : vector<256x256xf32> to vector<256x128xf32>
    %8 = math.tanh %7 : vector<256x128xf32>
    %9 = vector.extract_strided_slice %6 {offsets = [0, 128], sizes = [256, 128], strides = [1, 1]} : vector<256x256xf32> to vector<256x128xf32>
    %10 = arith.negf %9 : vector<256x128xf32>
    %11 = math.exp %10 : vector<256x128xf32>
    %cst_5 = arith.constant 1.000000e+00 : f32
    %12 = vector.broadcast %cst_5 : f32 to vector<256x128xf32>
    %13 = arith.addf %12, %11 : vector<256x128xf32>
    %14 = arith.divf %12, %13 : vector<256x128xf32>
    %15 = arith.mulf %8, %14 : vector<256x128xf32>
    %16 = arith.truncf %15 : vector<256x128xf32> to vector<256x128xbf16>
    %c0_6 = arith.constant 0 : index
    %c0_7 = arith.constant 0 : index
    %17 = vector.load %arg4[%c0_6, %c0_7] : memref<1x128xbf16, #tpu.memory_space<vmem>>, vector<1x128xbf16>
    %cst_8 = arith.constant dense<0.000000e+00> : vector<1x256xf32>
    %18 = tpu.matmul %17, %16, %cst_8 {dimension_numbers = #tpu.dot_dimension_numbers<[1], [1], [0], [0], [0, 0, 1, 0], [], []>} : vector<1x128xbf16>, vector<256x128xbf16>, vector<1x256xf32> -> vector<1x256xf32>
    %c0_9 = arith.constant 0 : index
    %19 = memref.load %arg5[%c0_9] : memref<1xf32, #tpu.memory_space<smem>>
    %20 = vector.broadcast %19 : f32 to vector<1x256xf32>
    %21 = arith.addf %18, %20 : vector<1x256xf32>
    %c0_10 = arith.constant 0 : index
    %c0_11 = arith.constant 0 : index
    %22 = vector.load %arg6[%c0_10, %c0_11] : memref<1x256xf32, #tpu.memory_space<vmem>>, vector<1x256xf32>
    tpu.vector_store %arg6[%c0_10, %c0_11], %21 {strides = array<i32>} : memref<1x256xf32, #tpu.memory_space<vmem>>, vector<1x256xf32>,
    return
  }
  func.func @transform_0(%arg0: i32) -> (i32, i32) {
    %c0_i32 = arith.constant 0 : i32
    %c0_i32_0 = arith.constant 0 : i32
    return %arg0, %c0_i32 : i32, i32
  }
  func.func @transform_1(%arg0: i32) -> (i32, i32) {
    %c0_i32 = arith.constant 0 : i32
    %c0_i32_0 = arith.constant 0 : i32
    %c0_i32_1 = arith.constant 0 : i32
    return %c0_i32, %c0_i32_0 : i32, i32
  }
  func.func @transform_2(%arg0: i32) -> (i32, i32) {
    %c0_i32 = arith.constant 0 : i32
    %c0_i32_0 = arith.constant 0 : i32
    %c0_i32_1 = arith.constant 0 : i32
    return %c0_i32, %c0_i32_0 : i32, i32
  }
  func.func @transform_3(%arg0: i32) -> (i32, i32) {
    %c0_i32 = arith.constant 0 : i32
    %c0_i32_0 = arith.constant 0 : i32
    %c0_i32_1 = arith.constant 0 : i32
    return %c0_i32, %c0_i32_0 : i32, i32
  }
  func.func @transform_4(%arg0: i32) -> i32 {
    %c0_i32 = arith.constant 0 : i32
    %c0_i32_0 = arith.constant 0 : i32
    return %c0_i32 : i32
  }
  func.func @transform_5(%arg0: i32) -> (i32, i32) {
    %c0_i32 = arith.constant 0 : i32
    %c0_i32_0 = arith.constant 0 : i32
    return %c0_i32, %arg0 : i32, i32
  }
}

</mosaic_0001>

<llo_original>
// kernel: tpu_custom_call.1
$region0: #{tpu_custom_call.1}
  #allocation0 [shape = 'u32[]', space=smem, size = 0x4, offset = 0x4, fixed_abs, tag = 'smem constant byte address 0x4 - core index']
  #allocation1 [shape = 'u32[72,128]{1,0:T(1,128)}', space=vmem, size = 0x9000, scoped, tag = 'internal scratch']
  #allocation2 [shape = 'f32[1]{0:T(128)S(6)}', space=smem, size = 0x200, scoped, tag = 'scoped memory for tpu_custom_call.1']
  %s0 = inlined_call_operand.hbm [shape: f32[512,256], index: 0, kind: input, shape index: {}]
  %s1 = inlined_call_operand.hbm [shape: bf16[256,256], index: 1, kind: input, shape index: {}]
  %s2 = inlined_call_operand.vmem [shape: f32[1,256], index: 2, kind: input, shape index: {}]
  %s3 = inlined_call_operand.vmem [shape: bf16[1,128], index: 3, kind: input, shape index: {}]
  %s4 = inlined_call_operand.<no memory space> [shape: f32[1], index: 4, kind: input, shape index: {}]
  %s5 = inlined_call_operand.hbm [shape: f32[1,512], index: 5, kind: output, shape index: {}]
  %s6 = sld [smem:[#allocation0]]
  $region61: #{tpu_custom_call.1} parent=0
    _
  %s8 = ssub.s32 1, %s6
  %s9 = scalar_select 0, %s8, %s6
  %10 = sst [smem:[#allocation2]] %s4
  $region1: #{tpu_custom_call.1} parent=0
    #allocation3 [shape = 'u8[524288]{0}', space=vmem, size = 0x80000, scoped, tag = 'input window, operand 0']
    #allocation4 [shape = 's32[2]{0}', space=sflag, size = 0x8, scoped, tag = 'scoped memory for tpu_custom_call.1']
    #allocation5 [shape = 's32[2]{0}', space=sflag, size = 0x8, scoped, tag = 'scoped memory for tpu_custom_call.1']
    #allocation6 [shape = 'u8[131072]{0}', space=vmem, size = 0x20000, scoped, tag = 'input window, operand 1, single buffered']
    #allocation7 [shape = 's32[1]{0}', space=sflag, size = 0x4, scoped, tag = 'scoped memory for tpu_custom_call.1']
    #allocation8 [shape = 'u8[2048]{0}', space=vmem, size = 0x800, scoped, tag = 'output window, operand 0']
    %11 = vsyncpa [#allocation4], 0
    %s12 = scalar_lea.sflag [#allocation4], 1
    %13 = vsyncpa %s12, 0
    %14 = vsyncpa [#allocation7], 0
    %15 = vsyncpa [#allocation5], 0
    %s16 = scalar_lea.sflag [#allocation5], 1
    %17 = vsyncpa %s16, 0
    loop: start=0, step=1, limit=4
    $region2: #{tpu_custom_call.1} parent=1 // loop_pre_header
      _
    $region3: #{tpu_custom_call.1} parent=1 // loop_header
      %s19 = sphi 0, %s23
      %p20 = scmp.ge.s32.totalorder %s19, 4
      %s29 = sphi 0, %s31
      %s32 = sphi 0, %s29
      %s33 = sphi 0, %s32
      %s49 = sphi 0, %s33
      %s53 = sphi 0, %s53
      %s55 = sphi 0, %s53
      %s56 = sphi 0, %s55
      %s70 = sphi 0, %s56
      %s74 = sphi 0, %s74
      %s76 = sphi 0, %s74
      %s77 = sphi 0, %s76
      %s91 = sphi 0, %s77
      %s95 = sphi 0, %s95
      %s97 = sphi 0, %s95
      %s98 = sphi 0, %s97
      %s112 = sphi 0, %s98
      %s116 = sphi 0, %s116
      %s118 = sphi 0, %s116
      %s119 = sphi 0, %s118
      %s133 = sphi 0, %s119
      %s139 = sphi 0, %s141
      %s142 = sphi 0, %s139
      %s143 = sphi 0, %s142
      %s159 = sphi 0, %s143
    $region4: #{tpu_custom_call.1} parent=1 // loop_header_branch
      %22 = sbr.rel (%p20) target = $region8
    $region5: #{tpu_custom_call.1} parent=1 // loop_body
      %s24 = ssub.s32 %s19, 1
      %s25 = ssub.s32 %s19, 2
      %s26 = sadd.s32 %s19, 1
      %s27 = ssub.s32 %s19, %s26
      %p28 = scmp.eq.s32.totalorder %s27, 0
      %s30 = sadd.s32 %s29, 1
      %s31 = scalar_select %p28, %s29, %s30
      %p34 = pneg %p28
      %p35 = scmp.eq.s32.totalorder %s19, 1
      %p36 = por %p34, %p35
      %p37 = scmp.ne.s32.totalorder %s29, %s32
      %p38 = scmp.eq.s32.totalorder %s19, 0
      %p39 = por %p37, %p38
      %p40 = scmp.ne.s32.totalorder %s29, %s32
      %p41 = scmp.eq.s32.totalorder %s24, 1
      %p42 = por %p40, %p41
      %p43 = scmp.ne.s32.totalorder %s32, %s33
      %p44 = scmp.eq.s32.totalorder %s24, 0
      %p45 = por %p43, %p44
      %p46 = scmp.ne.s32.totalorder %s32, %s33
      %p47 = scmp.eq.s32.totalorder %s25, 1
      %p48 = por %p46, %p47
      %p50 = scmp.ne.s32.totalorder %s33, %s49
      %p51 = scmp.eq.s32.totalorder %s25, 0
      %p52 = por %p50, %p51
      %s54 = sadd.s32 %s53, 1
      %p57 = scmp.eq.s32.totalorder %s19, 1
      %p58 = scmp.ne.s32.totalorder %s53, %s55
      %p59 = scmp.eq.s32.totalorder %s19, 0
      %p60 = por %p58, %p59
      %p61 = scmp.ne.s32.totalorder %s53, %s55
      %p62 = scmp.eq.s32.totalorder %s24, 1
      %p63 = por %p61, %p62
      %p64 = scmp.ne.s32.totalorder %s55, %s56
      %p65 = scmp.eq.s32.totalorder %s24, 0
      %p66 = por %p64, %p65
      %p67 = scmp.ne.s32.totalorder %s55, %s56
      %p68 = scmp.eq.s32.totalorder %s25, 1
      %p69 = por %p67, %p68
      %p71 = scmp.ne.s32.totalorder %s56, %s70
      %p72 = scmp.eq.s32.totalorder %s25, 0
      %p73 = por %p71, %p72
      %s75 = sadd.s32 %s74, 1
      %p78 = scmp.eq.s32.totalorder %s19, 1
      %p79 = scmp.ne.s32.totalorder %s74, %s76
      %p80 = scmp.eq.s32.totalorder %s19, 0
      %p81 = por %p79, %p80
      %p82 = scmp.ne.s32.totalorder %s74, %s76
      %p83 = scmp.eq.s32.totalorder %s24, 1
      %p84 = por %p82, %p83
      %p85 = scmp.ne.s32.totalorder %s76, %s77
      %p86 = scmp.eq.s32.totalorder %s24, 0
      %p87 = por %p85, %p86
      %p88 = scmp.ne.s32.totalorder %s76, %s77
      %p89 = scmp.eq.s32.totalorder %s25, 1
      %p90 = por %p88, %p89
      %p92 = scmp.ne.s32.totalorder %s77, %s91
      %p93 = scmp.eq.s32.totalorder %s25, 0
      %p94 = por %p92, %p93
      %s96 = sadd.s32 %s95, 1
      %p99 = scmp.eq.s32.totalorder %s19, 1
      %p100 = scmp.ne.s32.totalorder %s95, %s97
      %p101 = scmp.eq.s32.totalorder %s19, 0
      %p102 = por %p100, %p101
      %p103 = scmp.ne.s32.totalorder %s95, %s97
      %p104 = scmp.eq.s32.totalorder %s24, 1
      %p105 = por %p103, %p104
      %p106 = scmp.ne.s32.totalorder %s97, %s98
      %p107 = scmp.eq.s32.totalorder %s24, 0
      %p108 = por %p106, %p107
      %p109 = scmp.ne.s32.totalorder %s97, %s98
      %p110 = scmp.eq.s32.totalorder %s25, 1
      %p111 = por %p109, %p110
      %p113 = scmp.ne.s32.totalorder %s98, %s112
      %p114 = scmp.eq.s32.totalorder %s25, 0
      %p115 = por %p113, %p114
      %s117 = sadd.s32 %s116, 1
      %p120 = scmp.eq.s32.totalorder %s19, 1
      %p121 = scmp.ne.s32.totalorder %s116, %s118
      %p122 = scmp.eq.s32.totalorder %s19, 0
      %p123 = por %p121, %p122
      %p124 = scmp.ne.s32.totalorder %s116, %s118
      %p125 = scmp.eq.s32.totalorder %s24, 1
      %p126 = por %p124, %p125
      %p127 = scmp.ne.s32.totalorder %s118, %s119
      %p128 = scmp.eq.s32.totalorder %s24, 0
      %p129 = por %p127, %p128
      %p130 = scmp.ne.s32.totalorder %s118, %s119
      %p131 = scmp.eq.s32.totalorder %s25, 1
      %p132 = por %p130, %p131
      %p134 = scmp.ne.s32.totalorder %s119, %s133
      %p135 = scmp.eq.s32.totalorder %s25, 0
      %p136 = por %p134, %p135
      %s137 = ssub.s32 %s19, %s26
      %p138 = scmp.eq.s32.totalorder %s137, 0
      %s140 = sadd.s32 %s139, 1
      %s141 = scalar_select %p138, %s139, %s140
      %p144 = pneg %p138
      %p145 = scmp.eq.s32.totalorder %s19, 1
      %p146 = por %p144, %p145
      %p147 = scmp.ne.s32.totalorder %s139, %s142
      %p148 = scmp.eq.s32.totalorder %s19, 0
      %p149 = por %p147, %p148
      %p150 = scmp.ne.s32.totalorder %s139, %s142
      %p151 = scmp.eq.s32.totalorder %s24, 1
      %p152 = por %p150, %p151
      %p153 = scmp.ne.s32.totalorder %s142, %s143
      %p154 = scmp.eq.s32.totalorder %s24, 0
      %p155 = por %p153, %p154
      %p156 = scmp.ne.s32.totalorder %s142, %s143
      %p157 = scmp.eq.s32.totalorder %s25, 1
      %p158 = por %p156, %p157
      %p160 = scmp.ne.s32.totalorder %s143, %s159
      %p161 = scmp.eq.s32.totalorder %s25, 0
      %p162 = por %p160, %p161
      %p163 = scmp.le.s32.totalorder 1, %s19
      %p164 = scmp.lt.s32.totalorder %s19, 3
      %p165 = pnand %p163, %p164
      %p166 = pneg %p165
      // Predicated region
      $region9: #{tpu_custom_call.1} parent=5 // pred_check
        _
      $region10: #{tpu_custom_call.1} parent=5 // pred_check_branch
        %168 = sbr.rel (%p165) target = $region12
      $region11: #{tpu_custom_call.1} parent=5 // pred_region
        %s169 = ssub.s32 %s19, 1
        // Predicated region
        $region13: #{tpu_custom_call.1} parent=11 // pred_check
          %p170 = pneg %p66
        $region14: #{tpu_custom_call.1} parent=11 // pred_check_branch
          %172 = sbr.rel (%p170) target = $region16
        $region15: #{tpu_custom_call.1} parent=11 // pred_region
          %174 = vsyncadd [#allocation7], 0
          %s175 = sshll.u32 %s1, 4
          %s176 = int_to_ptr.hbm [resolvable:$true] %s175
          %s177 = sshll.u32 [#allocation6], 4
          %s178 = int_to_ptr.vmem [resolvable:$true] %s177
          %183 = dma.hbm_to_vmem [thread:$0]  %s176, 4096, %s178, [#allocation7], 128, 128, 8
        $region16: #{tpu_custom_call.1} parent=11 // pred_fallthru
          _
        // Predicated region
        $region17: #{tpu_custom_call.1} parent=11 // pred_check
          %p184 = pneg %p87
        $region18: #{tpu_custom_call.1} parent=11 // pred_check_branch
          %186 = sbr.rel (%p184) target = $region20
        $region19: #{tpu_custom_call.1} parent=11 // pred_region
          _
        $region20: #{tpu_custom_call.1} parent=11 // pred_fallthru
          _
        // Predicated region
        $region21: #{tpu_custom_call.1} parent=11 // pred_check
          %p187 = pneg %p108
        $region22: #{tpu_custom_call.1} parent=11 // pred_check_branch
          %189 = sbr.rel (%p187) target = $region24
        $region23: #{tpu_custom_call.1} parent=11 // pred_region
          _
        $region24: #{tpu_custom_call.1} parent=11 // pred_fallthru
          _
        // Predicated region
        $region25: #{tpu_custom_call.1} parent=11 // pred_check
          %p190 = pneg %p129
        $region26: #{tpu_custom_call.1} parent=11 // pred_check_branch
          %192 = sbr.rel (%p190) target = $region28
        $region27: #{tpu_custom_call.1} parent=11 // pred_region
          _
        $region28: #{tpu_custom_call.1} parent=11 // pred_fallthru
          _
      $region12: #{tpu_custom_call.1} parent=5 // pred_fallthru
        _
      %p193 = scmp.lt.s32.totalorder %s19, 2
      // Predicated region
      $region29: #{tpu_custom_call.1} parent=5 // pred_check
        %p194 = pneg %p193
      $region30: #{tpu_custom_call.1} parent=5 // pred_check_branch
        %196 = sbr.rel (%p194) target = $region32
      $region31: #{tpu_custom_call.1} parent=5 // pred_region
        // Predicated region
        $region33: #{tpu_custom_call.1} parent=31 // pred_check
          %p197 = pneg %p39
        $region34: #{tpu_custom_call.1} parent=31 // pred_check_branch
          %199 = sbr.rel (%p197) target = $region36
        $region35: #{tpu_custom_call.1} parent=31 // pred_region
          %s200 = sand.u32 %s29, 1
          %s201 = scalar_lea.sflag [#allocation4], %s200
          %s202 = sand.u32 %s29, 1
          %s203 = smul.addr %s202, 512
          %s204 = scalar_lea.vmem [#allocation3], %s203
          %s205 = smul.u32 32, %s19
          %207 = vsyncadd %s201, 0
          %s208 = smul.addr %s205, 2
          %s209 = smul.addr %s208, 8
          %s210 = scalar_lea.hbm %s0, %s209
          %s211 = sshll.u32 %s210, 4
          %s212 = int_to_ptr.hbm [resolvable:$true] %s211
          %s213 = sshll.u32 %s204, 4
          %s214 = int_to_ptr.vmem [resolvable:$true] %s213
          %219 = dma.hbm_to_vmem [thread:$0]  %s212, 8192, %s214, %s201, 256, 256, 16
        $region36: #{tpu_custom_call.1} parent=31 // pred_fallthru
          _
      $region32: #{tpu_custom_call.1} parent=5 // pred_fallthru
        _
      %p220 = scmp.le.s32.totalorder 1, %s19
      %p221 = scmp.lt.s32.totalorder %s19, 3
      %p222 = pnand %p220, %p221
      %p223 = pneg %p222
      // Predicated region
      $region37: #{tpu_custom_call.1} parent=5 // pred_check
        _
      $region38: #{tpu_custom_call.1} parent=5 // pred_check_branch
        %225 = sbr.rel (%p222) target = $region40
      $region39: #{tpu_custom_call.1} parent=5 // pred_region
        %s226 = ssub.s32 %s19, 1
        %s227 = sand.u32 %s32, 1
        %s228 = scalar_lea.sflag [#allocation4], %s227
        %s229 = sand.u32 %s32, 1
        %s230 = smul.addr %s229, 512
        %s231 = scalar_lea.vmem [#allocation3], %s230
        // Predicated region
        $region41: #{tpu_custom_call.1} parent=39 // pred_check
          %p232 = pneg %p45
        $region42: #{tpu_custom_call.1} parent=39 // pred_check_branch
          %234 = sbr.rel (%p232) target = $region44
        $region43: #{tpu_custom_call.1} parent=39 // pred_region
          %236 = dma.done %s228, 8192
        $region44: #{tpu_custom_call.1} parent=39 // pred_fallthru
          _
        // Predicated region
        $region45: #{tpu_custom_call.1} parent=39 // pred_check
          %p237 = pneg %p66
        $region46: #{tpu_custom_call.1} parent=39 // pred_check_branch
          %239 = sbr.rel (%p237) target = $region48
        $region47: #{tpu_custom_call.1} parent=39 // pred_region
          %241 = dma.done [#allocation7], 4096
        $region48: #{tpu_custom_call.1} parent=39 // pred_fallthru
          _
        %s242 = sand.u32 %s32, 1
        %s243 = scalar_lea.sflag [#allocation4], %s242
        %s244 = sand.u32 %s32, 1
        %s245 = smul.addr %s244, 512
        %s246 = scalar_lea.vmem [#allocation3], %s245
        %p247 = pneg %p45
        %p248 = pneg %p42
        %p249 = pneg %p66
        %p250 = pneg %p63
        %p251 = pneg %p87
        %p252 = pneg %p84
        %p253 = pneg %p108
        %p254 = pneg %p105
        %p255 = pneg %p129
        %p256 = pneg %p126
        %p257 = pneg %p155
        %p258 = pneg %p152
        %s259 = sand.u32 %s142, 1
        %s260 = scalar_lea.sflag [#allocation5], %s259
        %s261 = sand.u32 %s142, 1
        %s262 = smul.addr %s261, 2
        %s263 = scalar_lea.vmem [#allocation8], %s262
        %s264 = smul.u32 32, %s24
        %s265 = smul.u32 2, %s24
        %v266 = vld [vmem:[%s231] sm:$0xff]
        %v267 = vld [vmem:[%s231 + $0x8] sm:$0xff]
        %v268 = vld [vmem:[%s231 + $0x10] sm:$0xff]
        %v269 = vld [vmem:[%s231 + $0x18] sm:$0xff]
        %v270 = vld [vmem:[%s231 + $0x20] sm:$0xff]
        %v271 = vld [vmem:[%s231 + $0x28] sm:$0xff]
        %v272 = vld [vmem:[%s231 + $0x30] sm:$0xff]
        %v273 = vld [vmem:[%s231 + $0x38] sm:$0xff]
        %v274 = vld [vmem:[%s231 + $0x40] sm:$0xff]
        %v275 = vld [vmem:[%s231 + $0x48] sm:$0xff]
        %v276 = vld [vmem:[%s231 + $0x50] sm:$0xff]
        %v277 = vld [vmem:[%s231 + $0x58] sm:$0xff]
        %v278 = vld [vmem:[%s231 + $0x60] sm:$0xff]
        %v279 = vld [vmem:[%s231 + $0x68] sm:$0xff]
        %v280 = vld [vmem:[%s231 + $0x70] sm:$0xff]
        %v281 = vld [vmem:[%s231 + $0x78] sm:$0xff]
        %v282 = vld [vmem:[%s231 + $0x80] sm:$0xff]
        %v283 = vld [vmem:[%s231 + $0x88] sm:$0xff]
        %v284 = vld [vmem:[%s231 + $0x90] sm:$0xff]
        %v285 = vld [vmem:[%s231 + $0x98] sm:$0xff]
        %v286 = vld [vmem:[%s231 + $0xa0] sm:$0xff]
        %v287 = vld [vmem:[%s231 + $0xa8] sm:$0xff]
        %v288 = vld [vmem:[%s231 + $0xb0] sm:$0xff]
        %v289 = vld [vmem:[%s231 + $0xb8] sm:$0xff]
        %v290 = vld [vmem:[%s231 + $0xc0] sm:$0xff]
        %v291 = vld [vmem:[%s231 + $0xc8] sm:$0xff]
        %v292 = vld [vmem:[%s231 + $0xd0] sm:$0xff]
        %v293 = vld [vmem:[%s231 + $0xd8] sm:$0xff]
        %v294 = vld [vmem:[%s231 + $0xe0] sm:$0xff]
        %v295 = vld [vmem:[%s231 + $0xe8] sm:$0xff]
        %v296 = vld [vmem:[%s231 + $0xf0] sm:$0xff]
        %v297 = vld [vmem:[%s231 + $0xf8] sm:$0xff]
        %v298 = vld [vmem:[%s231 + $0x100] sm:$0xff]
        %v299 = vld [vmem:[%s231 + $0x108] sm:$0xff]
        %v300 = vld [vmem:[%s231 + $0x110] sm:$0xff]
        %v301 = vld [vmem:[%s231 + $0x118] sm:$0xff]
        %v302 = vld [vmem:[%s231 + $0x120] sm:$0xff]
        %v303 = vld [vmem:[%s231 + $0x128] sm:$0xff]
        %v304 = vld [vmem:[%s231 + $0x130] sm:$0xff]
        %v305 = vld [vmem:[%s231 + $0x138] sm:$0xff]
        %v306 = vld [vmem:[%s231 + $0x140] sm:$0xff]
        %v307 = vld [vmem:[%s231 + $0x148] sm:$0xff]
        %v308 = vld [vmem:[%s231 + $0x150] sm:$0xff]
        %v309 = vld [vmem:[%s231 + $0x158] sm:$0xff]
        %v310 = vld [vmem:[%s231 + $0x160] sm:$0xff]
        %v311 = vld [vmem:[%s231 + $0x168] sm:$0xff]
        %v312 = vld [vmem:[%s231 + $0x170] sm:$0xff]
        %v313 = vld [vmem:[%s231 + $0x178] sm:$0xff]
        %v314 = vld [vmem:[%s231 + $0x180] sm:$0xff]
        %v315 = vld [vmem:[%s231 + $0x188] sm:$0xff]
        %v316 = vld [vmem:[%s231 + $0x190] sm:$0xff]
        %v317 = vld [vmem:[%s231 + $0x198] sm:$0xff]
        %v318 = vld [vmem:[%s231 + $0x1a0] sm:$0xff]
        %v319 = vld [vmem:[%s231 + $0x1a8] sm:$0xff]
        %v320 = vld [vmem:[%s231 + $0x1b0] sm:$0xff]
        %v321 = vld [vmem:[%s231 + $0x1b8] sm:$0xff]
        %v322 = vld [vmem:[%s231 + $0x1c0] sm:$0xff]
        %v323 = vld [vmem:[%s231 + $0x1c8] sm:$0xff]
        %v324 = vld [vmem:[%s231 + $0x1d0] sm:$0xff]
        %v325 = vld [vmem:[%s231 + $0x1d8] sm:$0xff]
        %v326 = vld [vmem:[%s231 + $0x1e0] sm:$0xff]
        %v327 = vld [vmem:[%s231 + $0x1e8] sm:$0xff]
        %v328 = vld [vmem:[%s231 + $0x1f0] sm:$0xff]
        %v329 = vld [vmem:[%s231 + $0x1f8] sm:$0xff]
        %v330 = vpack.c.bf16 %v268, %v266
        %v331 = vpack.c.bf16 %v269, %v267
        %v332 = vpack.c.bf16 %v272, %v270
        %v333 = vpack.c.bf16 %v273, %v271
        %v334 = vpack.c.bf16 %v276, %v274
        %v335 = vpack.c.bf16 %v277, %v275
        %v336 = vpack.c.bf16 %v280, %v278
        %v337 = vpack.c.bf16 %v281, %v279
        %v338 = vpack.c.bf16 %v284, %v282
        %v339 = vpack.c.bf16 %v285, %v283
        %v340 = vpack.c.bf16 %v288, %v286
        %v341 = vpack.c.bf16 %v289, %v287
        %v342 = vpack.c.bf16 %v292, %v290
        %v343 = vpack.c.bf16 %v293, %v291
        %v344 = vpack.c.bf16 %v296, %v294
        %v345 = vpack.c.bf16 %v297, %v295
        %v346 = vpack.c.bf16 %v300, %v298
        %v347 = vpack.c.bf16 %v301, %v299
        %v348 = vpack.c.bf16 %v304, %v302
        %v349 = vpack.c.bf16 %v305, %v303
        %v350 = vpack.c.bf16 %v308, %v306
        %v351 = vpack.c.bf16 %v309, %v307
        %v352 = vpack.c.bf16 %v312, %v310
        %v353 = vpack.c.bf16 %v313, %v311
        %v354 = vpack.c.bf16 %v316, %v314
        %v355 = vpack.c.bf16 %v317, %v315
        %v356 = vpack.c.bf16 %v320, %v318
        %v357 = vpack.c.bf16 %v321, %v319
        %v358 = vpack.c.bf16 %v324, %v322
        %v359 = vpack.c.bf16 %v325, %v323
        %v360 = vpack.c.bf16 %v328, %v326
        %v361 = vpack.c.bf16 %v329, %v327
        %v362 = vld [vmem:[#allocation6] sm:$0xff]
        %v363 = vld [vmem:[#allocation6 + $0x8] sm:$0xff]
        %v364 = vld [vmem:[#allocation6 + $0x10] sm:$0xff]
        %v365 = vld [vmem:[#allocation6 + $0x18] sm:$0xff]
        %v366 = vld [vmem:[#allocation6 + $0x20] sm:$0xff]
        %v367 = vld [vmem:[#allocation6 + $0x28] sm:$0xff]
        %v368 = vld [vmem:[#allocation6 + $0x30] sm:$0xff]
        %v369 = vld [vmem:[#allocation6 + $0x38] sm:$0xff]
        %v370 = vld [vmem:[#allocation6 + $0x40] sm:$0xff]
        %v371 = vld [vmem:[#allocation6 + $0x48] sm:$0xff]
        %v372 = vld [vmem:[#allocation6 + $0x50] sm:$0xff]
        %v373 = vld [vmem:[#allocation6 + $0x58] sm:$0xff]
        %v374 = vld [vmem:[#allocation6 + $0x60] sm:$0xff]
        %v375 = vld [vmem:[#allocation6 + $0x68] sm:$0xff]
        %v376 = vld [vmem:[#allocation6 + $0x70] sm:$0xff]
        %v377 = vld [vmem:[#allocation6 + $0x78] sm:$0xff]
        %v378 = vld [vmem:[#allocation6 + $0x80] sm:$0xff]
        %v379 = vld [vmem:[#allocation6 + $0x88] sm:$0xff]
        %v380 = vld [vmem:[#allocation6 + $0x90] sm:$0xff]
        %v381 = vld [vmem:[#allocation6 + $0x98] sm:$0xff]
        %v382 = vld [vmem:[#allocation6 + $0xa0] sm:$0xff]
        %v383 = vld [vmem:[#allocation6 + $0xa8] sm:$0xff]
        %v384 = vld [vmem:[#allocation6 + $0xb0] sm:$0xff]
        %v385 = vld [vmem:[#allocation6 + $0xb8] sm:$0xff]
        %v386 = vld [vmem:[#allocation6 + $0xc0] sm:$0xff]
        %v387 = vld [vmem:[#allocation6 + $0xc8] sm:$0xff]
        %v388 = vld [vmem:[#allocation6 + $0xd0] sm:$0xff]
        %v389 = vld [vmem:[#allocation6 + $0xd8] sm:$0xff]
        %v390 = vld [vmem:[#allocation6 + $0xe0] sm:$0xff]
        %v391 = vld [vmem:[#allocation6 + $0xe8] sm:$0xff]
        %v392 = vld [vmem:[#allocation6 + $0xf0] sm:$0xff]
        %v393 = vld [vmem:[#allocation6 + $0xf8] sm:$0xff]
        %v394 = vld [vmem:[%s2] sm:$0x3]
        %v396 = vperm.slane %v394, 0
        %v397 = vperm.slane %v394, 1
        %v432 = vunpack.c.l.b16 %v362
        %v433 = vunpack.c.h.b16 %v362
        %v434 = vunpack.c.l.b16 %v363
        %v435 = vunpack.c.h.b16 %v363
        %v436 = vunpack.c.l.b16 %v364
        %v437 = vunpack.c.h.b16 %v364
        %v438 = vunpack.c.l.b16 %v365
        %v439 = vunpack.c.h.b16 %v365
        %v440 = vunpack.c.l.b16 %v366
        %v441 = vunpack.c.h.b16 %v366
        %v442 = vunpack.c.l.b16 %v367
        %v443 = vunpack.c.h.b16 %v367
        %v444 = vunpack.c.l.b16 %v368
        %v445 = vunpack.c.h.b16 %v368
        %v446 = vunpack.c.l.b16 %v369
        %v447 = vunpack.c.h.b16 %v369
        %v448 = vunpack.c.l.b16 %v370
        %v449 = vunpack.c.h.b16 %v370
        %v450 = vunpack.c.l.b16 %v371
        %v451 = vunpack.c.h.b16 %v371
        %v452 = vunpack.c.l.b16 %v372
        %v453 = vunpack.c.h.b16 %v372
        %v454 = vunpack.c.l.b16 %v373
        %v455 = vunpack.c.h.b16 %v373
        %v456 = vunpack.c.l.b16 %v374
        %v457 = vunpack.c.h.b16 %v374
        %v458 = vunpack.c.l.b16 %v375
        %v459 = vunpack.c.h.b16 %v375
        %v460 = vunpack.c.l.b16 %v376
        %v461 = vunpack.c.h.b16 %v376
        %v462 = vunpack.c.l.b16 %v377
        %v463 = vunpack.c.h.b16 %v377
        %v464 = vunpack.c.l.b16 %v378
        %v465 = vunpack.c.h.b16 %v378
        %v466 = vunpack.c.l.b16 %v379
        %v467 = vunpack.c.h.b16 %v379
        %v468 = vunpack.c.l.b16 %v380
        %v469 = vunpack.c.h.b16 %v380
        %v470 = vunpack.c.l.b16 %v381
        %v471 = vunpack.c.h.b16 %v381
        %v472 = vunpack.c.l.b16 %v382
        %v473 = vunpack.c.h.b16 %v382
        %v474 = vunpack.c.l.b16 %v383
        %v475 = vunpack.c.h.b16 %v383
        %v476 = vunpack.c.l.b16 %v384
        %v477 = vunpack.c.h.b16 %v384
        %v478 = vunpack.c.l.b16 %v385
        %v479 = vunpack.c.h.b16 %v385
        %v480 = vunpack.c.l.b16 %v386
        %v481 = vunpack.c.h.b16 %v386
        %v482 = vunpack.c.l.b16 %v387
        %v483 = vunpack.c.h.b16 %v387
        %v484 = vunpack.c.l.b16 %v388
        %v485 = vunpack.c.h.b16 %v388
        %v486 = vunpack.c.l.b16 %v389
        %v487 = vunpack.c.h.b16 %v389
        %v488 = vunpack.c.l.b16 %v390
        %v489 = vunpack.c.h.b16 %v390
        %v490 = vunpack.c.l.b16 %v391
        %v491 = vunpack.c.h.b16 %v391
        %v492 = vunpack.c.l.b16 %v392
        %v493 = vunpack.c.h.b16 %v392
        %v494 = vunpack.c.l.b16 %v393
        %v495 = vunpack.c.h.b16 %v393
        %v496 = vpack.c.b16 %v434, %v432
        %v497 = vpack.c.b16 %v435, %v433
        %v498 = vpack.c.b16 %v438, %v436
        %v499 = vpack.c.b16 %v439, %v437
        %v500 = vpack.c.b16 %v442, %v440
        %v501 = vpack.c.b16 %v443, %v441
        %v502 = vpack.c.b16 %v446, %v444
        %v503 = vpack.c.b16 %v447, %v445
        %v504 = vpack.c.b16 %v450, %v448
        %v505 = vpack.c.b16 %v451, %v449
        %v506 = vpack.c.b16 %v454, %v452
        %v507 = vpack.c.b16 %v455, %v453
        %v508 = vpack.c.b16 %v458, %v456
        %v509 = vpack.c.b16 %v459, %v457
        %v510 = vpack.c.b16 %v462, %v460
        %v511 = vpack.c.b16 %v463, %v461
        %v512 = vpack.c.b16 %v466, %v464
        %v513 = vpack.c.b16 %v467, %v465
        %v514 = vpack.c.b16 %v470, %v468
        %v515 = vpack.c.b16 %v471, %v469
        %v516 = vpack.c.b16 %v474, %v472
        %v517 = vpack.c.b16 %v475, %v473
        %v518 = vpack.c.b16 %v478, %v476
        %v519 = vpack.c.b16 %v479, %v477
        %v520 = vpack.c.b16 %v482, %v480
        %v521 = vpack.c.b16 %v483, %v481
        %v522 = vpack.c.b16 %v486, %v484
        %v523 = vpack.c.b16 %v487, %v485
        %v524 = vpack.c.b16 %v490, %v488
        %v525 = vpack.c.b16 %v491, %v489
        %v526 = vpack.c.b16 %v494, %v492
        %v527 = vpack.c.b16 %v495, %v493
        %560 = vmatpush.bf16.msra.mxu0 %v510
        %561 = vmatpush.bf16.msra.mxu0 %v508
        %562 = vmatpush.bf16.msra.mxu0 %v506
        %563 = vmatpush.bf16.msra.mxu0 %v504
        %564 = vmatpush.bf16.msra.mxu0 %v502
        %565 = vmatpush.bf16.msra.mxu0 %v500
        %566 = vmatpush.bf16.msra.mxu0 %v498
        %567 = vmatpush.bf16.msra.mxu0 %v496
        %568 = vmatmul.bf16.gmra.mxu0 %v330
        %v569 = vpop.f32.mrf.mxu0
        %v570 = vadd.f32 %v396, %v569
        %v571 = vpop.f32.mrf.mxu0
        %v572 = vadd.f32 %v396, %v571
        %573 = vmatmul.bf16.gmra.mxu0 %v332
        %v574 = vpop.f32.mrf.mxu0
        %v575 = vadd.f32 %v396, %v574
        %v576 = vpop.f32.mrf.mxu0
        %v577 = vadd.f32 %v396, %v576
        %578 = vmatmul.bf16.gmra.mxu0 %v334
        %v579 = vpop.f32.mrf.mxu0
        %v580 = vadd.f32 %v396, %v579
        %v581 = vpop.f32.mrf.mxu0
        %v582 = vadd.f32 %v396, %v581
        %583 = vmatmul.bf16.gmra.mxu0 %v336
        %v584 = vpop.f32.mrf.mxu0
        %v585 = vadd.f32 %v396, %v584
        %v586 = vpop.f32.mrf.mxu0
        %v587 = vadd.f32 %v396, %v586
        %588 = vmatmul.bf16.gmra.mxu0 %v338
        %v589 = vpop.f32.mrf.mxu0
        %v590 = vadd.f32 %v396, %v589
        %v591 = vpop.f32.mrf.mxu0
        %v592 = vadd.f32 %v396, %v591
        %593 = vmatmul.bf16.gmra.mxu0 %v340
        %v594 = vpop.f32.mrf.mxu0
        %v595 = vadd.f32 %v396, %v594
        %v596 = vpop.f32.mrf.mxu0
        %v597 = vadd.f32 %v396, %v596
        %598 = vmatmul.bf16.gmra.mxu0 %v342
        %v599 = vpop.f32.mrf.mxu0
        %v600 = vadd.f32 %v396, %v599
        %v601 = vpop.f32.mrf.mxu0
        %v602 = vadd.f32 %v396, %v601
        %603 = vmatmul.bf16.gmra.mxu0 %v344
        %v604 = vpop.f32.mrf.mxu0
        %v605 = vadd.f32 %v396, %v604
        %v606 = vpop.f32.mrf.mxu0
        %v607 = vadd.f32 %v396, %v606
        %608 = vmatmul.bf16.gmra.mxu0 %v346
        %v609 = vpop.f32.mrf.mxu0
        %v610 = vadd.f32 %v396, %v609
        %v611 = vpop.f32.mrf.mxu0
        %v612 = vadd.f32 %v396, %v611
        %613 = vmatmul.bf16.gmra.mxu0 %v348
        %v614 = vpop.f32.mrf.mxu0
        %v615 = vadd.f32 %v396, %v614
        %v616 = vpop.f32.mrf.mxu0
        %v617 = vadd.f32 %v396, %v616
        %618 = vmatmul.bf16.gmra.mxu0 %v350
        %v619 = vpop.f32.mrf.mxu0
        %v620 = vadd.f32 %v396, %v619
        %v621 = vpop.f32.mrf.mxu0
        %v622 = vadd.f32 %v396, %v621
        %623 = vmatmul.bf16.gmra.mxu0 %v352
        %v624 = vpop.f32.mrf.mxu0
        %v625 = vadd.f32 %v396, %v624
        %v626 = vpop.f32.mrf.mxu0
        %v627 = vadd.f32 %v396, %v626
        %628 = vmatmul.bf16.gmra.mxu0 %v354
        %v629 = vpop.f32.mrf.mxu0
        %v630 = vadd.f32 %v396, %v629
        %v631 = vpop.f32.mrf.mxu0
        %v632 = vadd.f32 %v396, %v631
        %633 = vmatmul.bf16.gmra.mxu0 %v356
        %v634 = vpop.f32.mrf.mxu0
        %v635 = vadd.f32 %v396, %v634
        %v636 = vpop.f32.mrf.mxu0
        %v637 = vadd.f32 %v396, %v636
        %638 = vmatmul.bf16.gmra.mxu0 %v358
        %v639 = vpop.f32.mrf.mxu0
        %v640 = vadd.f32 %v396, %v639
        %v641 = vpop.f32.mrf.mxu0
        %v642 = vadd.f32 %v396, %v641
        %643 = vmatmul.bf16.gmra.mxu0 %v360
        %v644 = vpop.f32.mrf.mxu0
        %v645 = vadd.f32 %v396, %v644
        %v646 = vpop.f32.mrf.mxu0
        %v647 = vadd.f32 %v396, %v646
        %648 = vdwg.mxu0
        %649 = vmatpush.bf16.msra.mxu0 %v526
        %650 = vmatpush.bf16.msra.mxu0 %v524
        %651 = vmatpush.bf16.msra.mxu0 %v522
        %652 = vmatpush.bf16.msra.mxu0 %v520
        %653 = vmatpush.bf16.msra.mxu0 %v518
        %654 = vmatpush.bf16.msra.mxu0 %v516
        %655 = vmatpush.bf16.msra.mxu0 %v514
        %656 = vmatpush.bf16.msra.mxu0 %v512
        %657 = vmatmul.bf16.gmra.mxu0 %v331
        %v658 = vpop.f32.mrf.mxu0
        %v659 = vadd.f32 %v570, %v658
        %v660 = vpop.f32.mrf.mxu0
        %v661 = vadd.f32 %v572, %v660
        %662 = vmatmul.bf16.gmra.mxu0 %v333
        %v663 = vpop.f32.mrf.mxu0
        %v664 = vadd.f32 %v575, %v663
        %v665 = vpop.f32.mrf.mxu0
        %v666 = vadd.f32 %v577, %v665
        %667 = vmatmul.bf16.gmra.mxu0 %v335
        %v668 = vpop.f32.mrf.mxu0
        %v669 = vadd.f32 %v580, %v668
        %v670 = vpop.f32.mrf.mxu0
        %v671 = vadd.f32 %v582, %v670
        %672 = vmatmul.bf16.gmra.mxu0 %v337
        %v673 = vpop.f32.mrf.mxu0
        %v674 = vadd.f32 %v585, %v673
        %v675 = vpop.f32.mrf.mxu0
        %v676 = vadd.f32 %v587, %v675
        %677 = vmatmul.bf16.gmra.mxu0 %v339
        %v678 = vpop.f32.mrf.mxu0
        %v679 = vadd.f32 %v590, %v678
        %v680 = vpop.f32.mrf.mxu0
        %v681 = vadd.f32 %v592, %v680
        %682 = vmatmul.bf16.gmra.mxu0 %v341
        %v683 = vpop.f32.mrf.mxu0
        %v684 = vadd.f32 %v595, %v683
        %v685 = vpop.f32.mrf.mxu0
        %v686 = vadd.f32 %v597, %v685
        %687 = vmatmul.bf16.gmra.mxu0 %v343
        %v688 = vpop.f32.mrf.mxu0
        %v689 = vadd.f32 %v600, %v688
        %v690 = vpop.f32.mrf.mxu0
        %v691 = vadd.f32 %v602, %v690
        %692 = vmatmul.bf16.gmra.mxu0 %v345
        %v693 = vpop.f32.mrf.mxu0
        %v694 = vadd.f32 %v605, %v693
        %v695 = vpop.f32.mrf.mxu0
        %v696 = vadd.f32 %v607, %v695
        %697 = vmatmul.bf16.gmra.mxu0 %v347
        %v698 = vpop.f32.mrf.mxu0
        %v699 = vadd.f32 %v610, %v698
        %v700 = vpop.f32.mrf.mxu0
        %v701 = vadd.f32 %v612, %v700
        %702 = vmatmul.bf16.gmra.mxu0 %v349
        %v703 = vpop.f32.mrf.mxu0
        %v704 = vadd.f32 %v615, %v703
        %v705 = vpop.f32.mrf.mxu0
        %v706 = vadd.f32 %v617, %v705
        %707 = vmatmul.bf16.gmra.mxu0 %v351
        %v708 = vpop.f32.mrf.mxu0
        %v709 = vadd.f32 %v620, %v708
        %v710 = vpop.f32.mrf.mxu0
        %v711 = vadd.f32 %v622, %v710
        %712 = vmatmul.bf16.gmra.mxu0 %v353
        %v713 = vpop.f32.mrf.mxu0
        %v714 = vadd.f32 %v625, %v713
        %v715 = vpop.f32.mrf.mxu0
        %v716 = vadd.f32 %v627, %v715
        %717 = vmatmul.bf16.gmra.mxu0 %v355
        %v718 = vpop.f32.mrf.mxu0
        %v719 = vadd.f32 %v630, %v718
        %v720 = vpop.f32.mrf.mxu0
        %v721 = vadd.f32 %v632, %v720
        %722 = vmatmul.bf16.gmra.mxu0 %v357
        %v723 = vpop.f32.mrf.mxu0
        %v724 = vadd.f32 %v635, %v723
        %v725 = vpop.f32.mrf.mxu0
        %v726 = vadd.f32 %v637, %v725
        %727 = vmatmul.bf16.gmra.mxu0 %v359
        %v728 = vpop.f32.mrf.mxu0
        %v729 = vadd.f32 %v640, %v728
        %v730 = vpop.f32.mrf.mxu0
        %v731 = vadd.f32 %v642, %v730
        %732 = vmatmul.bf16.gmra.mxu0 %v361
        %v733 = vpop.f32.mrf.mxu0
        %v734 = vadd.f32 %v645, %v733
        %v735 = vpop.f32.mrf.mxu0
        %v736 = vadd.f32 %v647, %v735
        %737 = vdwg.mxu0
        %738 = vmatpush.bf16.msra.mxu0 %v511
        %739 = vmatpush.bf16.msra.mxu0 %v509
        %740 = vmatpush.bf16.msra.mxu0 %v507
        %741 = vmatpush.bf16.msra.mxu0 %v505
        %742 = vmatpush.bf16.msra.mxu0 %v503
        %743 = vmatpush.bf16.msra.mxu0 %v501
        %744 = vmatpush.bf16.msra.mxu0 %v499
        %745 = vmatpush.bf16.msra.mxu0 %v497
        %746 = vmatmul.bf16.gmra.mxu0 %v330
        %v747 = vpop.f32.mrf.mxu0
        %v748 = vadd.f32 %v397, %v747
        %v749 = vpop.f32.mrf.mxu0
        %v750 = vadd.f32 %v397, %v749
        %751 = vmatmul.bf16.gmra.mxu0 %v332
        %v752 = vpop.f32.mrf.mxu0
        %v753 = vadd.f32 %v397, %v752
        %v754 = vpop.f32.mrf.mxu0
        %v755 = vadd.f32 %v397, %v754
        %756 = vmatmul.bf16.gmra.mxu0 %v334
        %v757 = vpop.f32.mrf.mxu0
        %v758 = vadd.f32 %v397, %v757
        %v759 = vpop.f32.mrf.mxu0
        %v760 = vadd.f32 %v397, %v759
        %761 = vmatmul.bf16.gmra.mxu0 %v336
        %v762 = vpop.f32.mrf.mxu0
        %v763 = vadd.f32 %v397, %v762
        %v764 = vpop.f32.mrf.mxu0
        %v765 = vadd.f32 %v397, %v764
        %766 = vmatmul.bf16.gmra.mxu0 %v338
        %v767 = vpop.f32.mrf.mxu0
        %v768 = vadd.f32 %v397, %v767
        %v769 = vpop.f32.mrf.mxu0
        %v770 = vadd.f32 %v397, %v769
        %771 = vmatmul.bf16.gmra.mxu0 %v340
        %v772 = vpop.f32.mrf.mxu0
        %v773 = vadd.f32 %v397, %v772
        %v774 = vpop.f32.mrf.mxu0
        %v775 = vadd.f32 %v397, %v774
        %776 = vmatmul.bf16.gmra.mxu0 %v342
        %v777 = vpop.f32.mrf.mxu0
        %v778 = vadd.f32 %v397, %v777
        %v779 = vpop.f32.mrf.mxu0
        %v780 = vadd.f32 %v397, %v779
        %781 = vmatmul.bf16.gmra.mxu0 %v344
        %v782 = vpop.f32.mrf.mxu0
        %v783 = vadd.f32 %v397, %v782
        %v784 = vpop.f32.mrf.mxu0
        %v785 = vadd.f32 %v397, %v784
        %786 = vmatmul.bf16.gmra.mxu0 %v346
        %v787 = vpop.f32.mrf.mxu0
        %v788 = vadd.f32 %v397, %v787
        %v789 = vpop.f32.mrf.mxu0
        %v790 = vadd.f32 %v397, %v789
        %791 = vmatmul.bf16.gmra.mxu0 %v348
        %v792 = vpop.f32.mrf.mxu0
        %v793 = vadd.f32 %v397, %v792
        %v794 = vpop.f32.mrf.mxu0
        %v795 = vadd.f32 %v397, %v794
        %796 = vmatmul.bf16.gmra.mxu0 %v350
        %v797 = vpop.f32.mrf.mxu0
        %v798 = vadd.f32 %v397, %v797
        %v799 = vpop.f32.mrf.mxu0
        %v800 = vadd.f32 %v397, %v799
        %801 = vmatmul.bf16.gmra.mxu0 %v352
        %v802 = vpop.f32.mrf.mxu0
        %v803 = vadd.f32 %v397, %v802
        %v804 = vpop.f32.mrf.mxu0
        %v805 = vadd.f32 %v397, %v804
        %806 = vmatmul.bf16.gmra.mxu0 %v354
        %v807 = vpop.f32.mrf.mxu0
        %v808 = vadd.f32 %v397, %v807
        %v809 = vpop.f32.mrf.mxu0
        %v810 = vadd.f32 %v397, %v809
        %811 = vmatmul.bf16.gmra.mxu0 %v356
        %v812 = vpop.f32.mrf.mxu0
        %v813 = vadd.f32 %v397, %v812
        %v814 = vpop.f32.mrf.mxu0
        %v815 = vadd.f32 %v397, %v814
        %816 = vmatmul.bf16.gmra.mxu0 %v358
        %v817 = vpop.f32.mrf.mxu0
        %v818 = vadd.f32 %v397, %v817
        %v819 = vpop.f32.mrf.mxu0
        %v820 = vadd.f32 %v397, %v819
        %821 = vmatmul.bf16.gmra.mxu0 %v360
        %v822 = vpop.f32.mrf.mxu0
        %v823 = vadd.f32 %v397, %v822
        %v824 = vpop.f32.mrf.mxu0
        %v825 = vadd.f32 %v397, %v824
        %826 = vdwg.mxu0
        %827 = vmatpush.bf16.msra.mxu0 %v527
        %828 = vmatpush.bf16.msra.mxu0 %v525
        %829 = vmatpush.bf16.msra.mxu0 %v523
        %830 = vmatpush.bf16.msra.mxu0 %v521
        %831 = vmatpush.bf16.msra.mxu0 %v519
        %832 = vmatpush.bf16.msra.mxu0 %v517
        %833 = vmatpush.bf16.msra.mxu0 %v515
        %834 = vmatpush.bf16.msra.mxu0 %v513
        %835 = vmatmul.bf16.gmra.mxu0 %v331
        %v836 = vpop.f32.mrf.mxu0
        %v837 = vadd.f32 %v748, %v836
        %v838 = vpop.f32.mrf.mxu0
        %v839 = vadd.f32 %v750, %v838
        %840 = vmatmul.bf16.gmra.mxu0 %v333
        %v841 = vpop.f32.mrf.mxu0
        %v842 = vadd.f32 %v753, %v841
        %v843 = vpop.f32.mrf.mxu0
        %v844 = vadd.f32 %v755, %v843
        %845 = vmatmul.bf16.gmra.mxu0 %v335
        %v846 = vpop.f32.mrf.mxu0
        %v847 = vadd.f32 %v758, %v846
        %v848 = vpop.f32.mrf.mxu0
        %v849 = vadd.f32 %v760, %v848
        %850 = vmatmul.bf16.gmra.mxu0 %v337
        %v851 = vpop.f32.mrf.mxu0
        %v852 = vadd.f32 %v763, %v851
        %v853 = vpop.f32.mrf.mxu0
        %v854 = vadd.f32 %v765, %v853
        %855 = vmatmul.bf16.gmra.mxu0 %v339
        %v856 = vpop.f32.mrf.mxu0
        %v857 = vadd.f32 %v768, %v856
        %v858 = vpop.f32.mrf.mxu0
        %v859 = vadd.f32 %v770, %v858
        %860 = vmatmul.bf16.gmra.mxu0 %v341
        %v861 = vpop.f32.mrf.mxu0
        %v862 = vadd.f32 %v773, %v861
        %v863 = vpop.f32.mrf.mxu0
        %v864 = vadd.f32 %v775, %v863
        %865 = vmatmul.bf16.gmra.mxu0 %v343
        %v866 = vpop.f32.mrf.mxu0
        %v867 = vadd.f32 %v778, %v866
        %v868 = vpop.f32.mrf.mxu0
        %v869 = vadd.f32 %v780, %v868
        %870 = vmatmul.bf16.gmra.mxu0 %v345
        %v871 = vpop.f32.mrf.mxu0
        %v872 = vadd.f32 %v783, %v871
        %v873 = vpop.f32.mrf.mxu0
        %v874 = vadd.f32 %v785, %v873
        %875 = vmatmul.bf16.gmra.mxu0 %v347
        %v876 = vpop.f32.mrf.mxu0
        %v877 = vadd.f32 %v788, %v876
        %v878 = vpop.f32.mrf.mxu0
        %v879 = vadd.f32 %v790, %v878
        %880 = vmatmul.bf16.gmra.mxu0 %v349
        %v881 = vpop.f32.mrf.mxu0
        %v882 = vadd.f32 %v793, %v881
        %v883 = vpop.f32.mrf.mxu0
        %v884 = vadd.f32 %v795, %v883
        %885 = vmatmul.bf16.gmra.mxu0 %v351
        %v886 = vpop.f32.mrf.mxu0
        %v887 = vadd.f32 %v798, %v886
        %v888 = vpop.f32.mrf.mxu0
        %v889 = vadd.f32 %v800, %v888
        %890 = vmatmul.bf16.gmra.mxu0 %v353
        %v891 = vpop.f32.mrf.mxu0
        %v892 = vadd.f32 %v803, %v891
        %v893 = vpop.f32.mrf.mxu0
        %v894 = vadd.f32 %v805, %v893
        %895 = vmatmul.bf16.gmra.mxu0 %v355
        %v896 = vpop.f32.mrf.mxu0
        %v897 = vadd.f32 %v808, %v896
        %v898 = vpop.f32.mrf.mxu0
        %v899 = vadd.f32 %v810, %v898
        %900 = vmatmul.bf16.gmra.mxu0 %v357
        %v901 = vpop.f32.mrf.mxu0
        %v902 = vadd.f32 %v813, %v901
        %v903 = vpop.f32.mrf.mxu0
        %v904 = vadd.f32 %v815, %v903
        %905 = vmatmul.bf16.gmra.mxu0 %v359
        %v906 = vpop.f32.mrf.mxu0
        %v907 = vadd.f32 %v818, %v906
        %v908 = vpop.f32.mrf.mxu0
        %v909 = vadd.f32 %v820, %v908
        %910 = vmatmul.bf16.gmra.mxu0 %v361
        %v911 = vpop.f32.mrf.mxu0
        %v912 = vadd.f32 %v823, %v911
        %v913 = vpop.f32.mrf.mxu0
        %v914 = vadd.f32 %v825, %v913
        %915 = vdwg.mxu0
        %v916 = vtanh.pop %v659
        %v917 = vtanh.pop %v661
        %v918 = vtanh.pop %v664
        %v919 = vtanh.pop %v666
        %v920 = vtanh.pop %v669
        %v921 = vtanh.pop %v671
        %v922 = vtanh.pop %v674
        %v923 = vtanh.pop %v676
        %v924 = vtanh.pop %v679
        %v925 = vtanh.pop %v681
        %v926 = vtanh.pop %v684
        %v927 = vtanh.pop %v686
        %v928 = vtanh.pop %v689
        %v929 = vtanh.pop %v691
        %v930 = vtanh.pop %v694
        %v931 = vtanh.pop %v696
        %v932 = vtanh.pop %v699
        %v933 = vtanh.pop %v701
        %v934 = vtanh.pop %v704
        %v935 = vtanh.pop %v706
        %v936 = vtanh.pop %v709
        %v937 = vtanh.pop %v711
        %v938 = vtanh.pop %v714
        %v939 = vtanh.pop %v716
        %v940 = vtanh.pop %v719
        %v941 = vtanh.pop %v721
        %v942 = vtanh.pop %v724
        %v943 = vtanh.pop %v726
        %v944 = vtanh.pop %v729
        %v945 = vtanh.pop %v731
        %v946 = vtanh.pop %v734
        %v947 = vtanh.pop %v736
        %v948 = vxor.u32 %v837, 2147483648
        %v949 = vxor.u32 %v839, 2147483648
        %v950 = vxor.u32 %v842, 2147483648
        %v951 = vxor.u32 %v844, 2147483648
        %v952 = vxor.u32 %v847, 2147483648
        %v953 = vxor.u32 %v849, 2147483648
        %v954 = vxor.u32 %v852, 2147483648
        %v955 = vxor.u32 %v854, 2147483648
        %v956 = vxor.u32 %v857, 2147483648
        %v957 = vxor.u32 %v859, 2147483648
        %v958 = vxor.u32 %v862, 2147483648
        %v959 = vxor.u32 %v864, 2147483648
        %v960 = vxor.u32 %v867, 2147483648
        %v961 = vxor.u32 %v869, 2147483648
        %v962 = vxor.u32 %v872, 2147483648
        %v963 = vxor.u32 %v874, 2147483648
        %v964 = vxor.u32 %v877, 2147483648
        %v965 = vxor.u32 %v879, 2147483648
        %v966 = vxor.u32 %v882, 2147483648
        %v967 = vxor.u32 %v884, 2147483648
        %v968 = vxor.u32 %v887, 2147483648
        %v969 = vxor.u32 %v889, 2147483648
        %v970 = vxor.u32 %v892, 2147483648
        %v971 = vxor.u32 %v894, 2147483648
        %v972 = vxor.u32 %v897, 2147483648
        %v973 = vxor.u32 %v899, 2147483648
        %v974 = vxor.u32 %v902, 2147483648
        %v975 = vxor.u32 %v904, 2147483648
        %v976 = vxor.u32 %v907, 2147483648
        %v977 = vxor.u32 %v909, 2147483648
        %v978 = vxor.u32 %v912, 2147483648
        %v979 = vxor.u32 %v914, 2147483648
        %v980 = vmul.f32 %v948, 1.442695
        %v981 = vpow.pop %v980
        %v982 = vmul.f32 %v949, 1.442695
        %v983 = vpow.pop %v982
        %v984 = vmul.f32 %v950, 1.442695
        %v985 = vpow.pop %v984
        %v986 = vmul.f32 %v951, 1.442695
        %v987 = vpow.pop %v986
        %v988 = vmul.f32 %v952, 1.442695
        %v989 = vpow.pop %v988
        %v990 = vmul.f32 %v953, 1.442695
        %v991 = vpow.pop %v990
        %v992 = vmul.f32 %v954, 1.442695
        %v993 = vpow.pop %v992
        %v994 = vmul.f32 %v955, 1.442695
        %v995 = vpow.pop %v994
        %v996 = vmul.f32 %v956, 1.442695
        %v997 = vpow.pop %v996
        %v998 = vmul.f32 %v957, 1.442695
        %v999 = vpow.pop %v998
        %v1000 = vmul.f32 %v958, 1.442695
        %v1001 = vpow.pop %v1000
        %v1002 = vmul.f32 %v959, 1.442695
        %v1003 = vpow.pop %v1002
        %v1004 = vmul.f32 %v960, 1.442695
        %v1005 = vpow.pop %v1004
        %v1006 = vmul.f32 %v961, 1.442695
        %v1007 = vpow.pop %v1006
        %v1008 = vmul.f32 %v962, 1.442695
        %v1009 = vpow.pop %v1008
        %v1010 = vmul.f32 %v963, 1.442695
        %v1011 = vpow.pop %v1010
        %v1012 = vmul.f32 %v964, 1.442695
        %v1013 = vpow.pop %v1012
        %v1014 = vmul.f32 %v965, 1.442695
        %v1015 = vpow.pop %v1014
        %v1016 = vmul.f32 %v966, 1.442695
        %v1017 = vpow.pop %v1016
        %v1018 = vmul.f32 %v967, 1.442695
        %v1019 = vpow.pop %v1018
        %v1020 = vmul.f32 %v968, 1.442695
        %v1021 = vpow.pop %v1020
        %v1022 = vmul.f32 %v969, 1.442695
        %v1023 = vpow.pop %v1022
        %v1024 = vmul.f32 %v970, 1.442695
        %v1025 = vpow.pop %v1024
        %v1026 = vmul.f32 %v971, 1.442695
        %v1027 = vpow.pop %v1026
        %v1028 = vmul.f32 %v972, 1.442695
        %v1029 = vpow.pop %v1028
        %v1030 = vmul.f32 %v973, 1.442695
        %v1031 = vpow.pop %v1030
        %v1032 = vmul.f32 %v974, 1.442695
        %v1033 = vpow.pop %v1032
        %v1034 = vmul.f32 %v975, 1.442695
        %v1035 = vpow.pop %v1034
        %v1036 = vmul.f32 %v976, 1.442695
        %v1037 = vpow.pop %v1036
        %v1038 = vmul.f32 %v977, 1.442695
        %v1039 = vpow.pop %v1038
        %v1040 = vmul.f32 %v978, 1.442695
        %v1041 = vpow.pop %v1040
        %v1042 = vmul.f32 %v979, 1.442695
        %v1043 = vpow.pop %v1042
        %v1044 = vadd.f32 %v981, 1.0
        %v1045 = vadd.f32 %v983, 1.0
        %v1046 = vadd.f32 %v985, 1.0
        %v1047 = vadd.f32 %v987, 1.0
        %v1048 = vadd.f32 %v989, 1.0
        %v1049 = vadd.f32 %v991, 1.0
        %v1050 = vadd.f32 %v993, 1.0
        %v1051 = vadd.f32 %v995, 1.0
        %v1052 = vadd.f32 %v997, 1.0
        %v1053 = vadd.f32 %v999, 1.0
        %v1054 = vadd.f32 %v1001, 1.0
        %v1055 = vadd.f32 %v1003, 1.0
        %v1056 = vadd.f32 %v1005, 1.0
        %v1057 = vadd.f32 %v1007, 1.0
        %v1058 = vadd.f32 %v1009, 1.0
        %v1059 = vadd.f32 %v1011, 1.0
        %v1060 = vadd.f32 %v1013, 1.0
        %v1061 = vadd.f32 %v1015, 1.0
        %v1062 = vadd.f32 %v1017, 1.0
        %v1063 = vadd.f32 %v1019, 1.0
        %v1064 = vadd.f32 %v1021, 1.0
        %v1065 = vadd.f32 %v1023, 1.0
        %v1066 = vadd.f32 %v1025, 1.0
        %v1067 = vadd.f32 %v1027, 1.0
        %v1068 = vadd.f32 %v1029, 1.0
        %v1069 = vadd.f32 %v1031, 1.0
        %v1070 = vadd.f32 %v1033, 1.0
        %v1071 = vadd.f32 %v1035, 1.0
        %v1072 = vadd.f32 %v1037, 1.0
        %v1073 = vadd.f32 %v1039, 1.0
        %v1074 = vadd.f32 %v1041, 1.0
        %v1075 = vadd.f32 %v1043, 1.0
        %v1076 = vrcp.pop %v1044
        %v1077 = vmul.f32 %v1044, %v1076
        %v1078 = vsub.f32 1.0, %v1077
        %v1079 = vmul.f32 %v1076, %v1078
        %v1080 = vadd.f32 %v1076, %v1079
        %vm1081 = vweird.f32 %v1044
        %vm1082 = vweird.f32 %v1076
        %vm1083 = vmor %vm1081, %vm1082
        %v1084 = vsel %vm1083, %v1076, %v1080
        %v1085 = vand.u32 2147483647, %v1044
        %vm1086 = vcmp.eq.f32.partialorder %v1085, 8.507059e+37
        %v1087 = vand.u32 %v1044, 2147483648
        %v1088 = vor.u32 1.1754944e-38, %v1087
        %v1089 = vsel %vm1086, %v1088, %v1084
        %v1090 = vmul.f32 1.0, %v1089
        %v1091 = vrcp.pop %v1045
        %v1092 = vmul.f32 %v1045, %v1091
        %v1093 = vsub.f32 1.0, %v1092
        %v1094 = vmul.f32 %v1091, %v1093
        %v1095 = vadd.f32 %v1091, %v1094
        %vm1096 = vweird.f32 %v1045
        %vm1097 = vweird.f32 %v1091
        %vm1098 = vmor %vm1096, %vm1097
        %v1099 = vsel %vm1098, %v1091, %v1095
        %v1100 = vand.u32 2147483647, %v1045
        %vm1101 = vcmp.eq.f32.partialorder %v1100, 8.507059e+37
        %v1102 = vand.u32 %v1045, 2147483648
        %v1103 = vor.u32 1.1754944e-38, %v1102
        %v1104 = vsel %vm1101, %v1103, %v1099
        %v1105 = vmul.f32 1.0, %v1104
        %v1106 = vrcp.pop %v1046
        %v1107 = vmul.f32 %v1046, %v1106
        %v1108 = vsub.f32 1.0, %v1107
        %v1109 = vmul.f32 %v1106, %v1108
        %v1110 = vadd.f32 %v1106, %v1109
        %vm1111 = vweird.f32 %v1046
        %vm1112 = vweird.f32 %v1106
        %vm1113 = vmor %vm1111, %vm1112
        %v1114 = vsel %vm1113, %v1106, %v1110
        %v1115 = vand.u32 2147483647, %v1046
        %vm1116 = vcmp.eq.f32.partialorder %v1115, 8.507059e+37
        %v1117 = vand.u32 %v1046, 2147483648
        %v1118 = vor.u32 1.1754944e-38, %v1117
        %v1119 = vsel %vm1116, %v1118, %v1114
        %v1120 = vmul.f32 1.0, %v1119
        %v1121 = vrcp.pop %v1047
        %v1122 = vmul.f32 %v1047, %v1121
        %v1123 = vsub.f32 1.0, %v1122
        %v1124 = vmul.f32 %v1121, %v1123
        %v1125 = vadd.f32 %v1121, %v1124
        %vm1126 = vweird.f32 %v1047
        %vm1127 = vweird.f32 %v1121
        %vm1128 = vmor %vm1126, %vm1127
        %v1129 = vsel %vm1128, %v1121, %v1125
        %v1130 = vand.u32 2147483647, %v1047
        %vm1131 = vcmp.eq.f32.partialorder %v1130, 8.507059e+37
        %v1132 = vand.u32 %v1047, 2147483648
        %v1133 = vor.u32 1.1754944e-38, %v1132
        %v1134 = vsel %vm1131, %v1133, %v1129
        %v1135 = vmul.f32 1.0, %v1134
        %v1136 = vrcp.pop %v1048
        %v1137 = vmul.f32 %v1048, %v1136
        %v1138 = vsub.f32 1.0, %v1137
        %v1139 = vmul.f32 %v1136, %v1138
        %v1140 = vadd.f32 %v1136, %v1139
        %vm1141 = vweird.f32 %v1048
        %vm1142 = vweird.f32 %v1136
        %vm1143 = vmor %vm1141, %vm1142
        %v1144 = vsel %vm1143, %v1136, %v1140
        %v1145 = vand.u32 2147483647, %v1048
        %vm1146 = vcmp.eq.f32.partialorder %v1145, 8.507059e+37
        %v1147 = vand.u32 %v1048, 2147483648
        %v1148 = vor.u32 1.1754944e-38, %v1147
        %v1149 = vsel %vm1146, %v1148, %v1144
        %v1150 = vmul.f32 1.0, %v1149
        %v1151 = vrcp.pop %v1049
        %v1152 = vmul.f32 %v1049, %v1151
        %v1153 = vsub.f32 1.0, %v1152
        %v1154 = vmul.f32 %v1151, %v1153
        %v1155 = vadd.f32 %v1151, %v1154
        %vm1156 = vweird.f32 %v1049
        %vm1157 = vweird.f32 %v1151
        %vm1158 = vmor %vm1156, %vm1157
        %v1159 = vsel %vm1158, %v1151, %v1155
        %v1160 = vand.u32 2147483647, %v1049
        %vm1161 = vcmp.eq.f32.partialorder %v1160, 8.507059e+37
        %v1162 = vand.u32 %v1049, 2147483648
        %v1163 = vor.u32 1.1754944e-38, %v1162
        %v1164 = vsel %vm1161, %v1163, %v1159
        %v1165 = vmul.f32 1.0, %v1164
        %v1166 = vrcp.pop %v1050
        %v1167 = vmul.f32 %v1050, %v1166
        %v1168 = vsub.f32 1.0, %v1167
        %v1169 = vmul.f32 %v1166, %v1168
        %v1170 = vadd.f32 %v1166, %v1169
        %vm1171 = vweird.f32 %v1050
        %vm1172 = vweird.f32 %v1166
        %vm1173 = vmor %vm1171, %vm1172
        %v1174 = vsel %vm1173, %v1166, %v1170
        %v1175 = vand.u32 2147483647, %v1050
        %vm1176 = vcmp.eq.f32.partialorder %v1175, 8.507059e+37
        %v1177 = vand.u32 %v1050, 2147483648
        %v1178 = vor.u32 1.1754944e-38, %v1177
        %v1179 = vsel %vm1176, %v1178, %v1174
        %v1180 = vmul.f32 1.0, %v1179
        %v1181 = vrcp.pop %v1051
        %v1182 = vmul.f32 %v1051, %v1181
        %v1183 = vsub.f32 1.0, %v1182
        %v1184 = vmul.f32 %v1181, %v1183
        %v1185 = vadd.f32 %v1181, %v1184
        %vm1186 = vweird.f32 %v1051
        %vm1187 = vweird.f32 %v1181
        %vm1188 = vmor %vm1186, %vm1187
        %v1189 = vsel %vm1188, %v1181, %v1185
        %v1190 = vand.u32 2147483647, %v1051
        %vm1191 = vcmp.eq.f32.partialorder %v1190, 8.507059e+37
        %v1192 = vand.u32 %v1051, 2147483648
        %v1193 = vor.u32 1.1754944e-38, %v1192
        %v1194 = vsel %vm1191, %v1193, %v1189
        %v1195 = vmul.f32 1.0, %v1194
        %v1196 = vrcp.pop %v1052
        %v1197 = vmul.f32 %v1052, %v1196
        %v1198 = vsub.f32 1.0, %v1197
        %v1199 = vmul.f32 %v1196, %v1198
        %v1200 = vadd.f32 %v1196, %v1199
        %vm1201 = vweird.f32 %v1052
        %vm1202 = vweird.f32 %v1196
        %vm1203 = vmor %vm1201, %vm1202
        %v1204 = vsel %vm1203, %v1196, %v1200
        %v1205 = vand.u32 2147483647, %v1052
        %vm1206 = vcmp.eq.f32.partialorder %v1205, 8.507059e+37
        %v1207 = vand.u32 %v1052, 2147483648
        %v1208 = vor.u32 1.1754944e-38, %v1207
        %v1209 = vsel %vm1206, %v1208, %v1204
        %v1210 = vmul.f32 1.0, %v1209
        %v1211 = vrcp.pop %v1053
        %v1212 = vmul.f32 %v1053, %v1211
        %v1213 = vsub.f32 1.0, %v1212
        %v1214 = vmul.f32 %v1211, %v1213
        %v1215 = vadd.f32 %v1211, %v1214
        %vm1216 = vweird.f32 %v1053
        %vm1217 = vweird.f32 %v1211
        %vm1218 = vmor %vm1216, %vm1217
        %v1219 = vsel %vm1218, %v1211, %v1215
        %v1220 = vand.u32 2147483647, %v1053
        %vm1221 = vcmp.eq.f32.partialorder %v1220, 8.507059e+37
        %v1222 = vand.u32 %v1053, 2147483648
        %v1223 = vor.u32 1.1754944e-38, %v1222
        %v1224 = vsel %vm1221, %v1223, %v1219
        %v1225 = vmul.f32 1.0, %v1224
        %v1226 = vrcp.pop %v1054
        %v1227 = vmul.f32 %v1054, %v1226
        %v1228 = vsub.f32 1.0, %v1227
        %v1229 = vmul.f32 %v1226, %v1228
        %v1230 = vadd.f32 %v1226, %v1229
        %vm1231 = vweird.f32 %v1054
        %vm1232 = vweird.f32 %v1226
        %vm1233 = vmor %vm1231, %vm1232
        %v1234 = vsel %vm1233, %v1226, %v1230
        %v1235 = vand.u32 2147483647, %v1054
        %vm1236 = vcmp.eq.f32.partialorder %v1235, 8.507059e+37
        %v1237 = vand.u32 %v1054, 2147483648
        %v1238 = vor.u32 1.1754944e-38, %v1237
        %v1239 = vsel %vm1236, %v1238, %v1234
        %v1240 = vmul.f32 1.0, %v1239
        %v1241 = vrcp.pop %v1055
        %v1242 = vmul.f32 %v1055, %v1241
        %v1243 = vsub.f32 1.0, %v1242
        %v1244 = vmul.f32 %v1241, %v1243
        %v1245 = vadd.f32 %v1241, %v1244
        %vm1246 = vweird.f32 %v1055
        %vm1247 = vweird.f32 %v1241
        %vm1248 = vmor %vm1246, %vm1247
        %v1249 = vsel %vm1248, %v1241, %v1245
        %v1250 = vand.u32 2147483647, %v1055
        %vm1251 = vcmp.eq.f32.partialorder %v1250, 8.507059e+37
        %v1252 = vand.u32 %v1055, 2147483648
        %v1253 = vor.u32 1.1754944e-38, %v1252
        %v1254 = vsel %vm1251, %v1253, %v1249
        %v1255 = vmul.f32 1.0, %v1254
        %v1256 = vrcp.pop %v1056
        %v1257 = vmul.f32 %v1056, %v1256
        %v1258 = vsub.f32 1.0, %v1257
        %v1259 = vmul.f32 %v1256, %v1258
        %v1260 = vadd.f32 %v1256, %v1259
        %vm1261 = vweird.f32 %v1056
        %vm1262 = vweird.f32 %v1256
        %vm1263 = vmor %vm1261, %vm1262
        %v1264 = vsel %vm1263, %v1256, %v1260
        %v1265 = vand.u32 2147483647, %v1056
        %vm1266 = vcmp.eq.f32.partialorder %v1265, 8.507059e+37
        %v1267 = vand.u32 %v1056, 2147483648
        %v1268 = vor.u32 1.1754944e-38, %v1267
        %v1269 = vsel %vm1266, %v1268, %v1264
        %v1270 = vmul.f32 1.0, %v1269
        %v1271 = vrcp.pop %v1057
        %v1272 = vmul.f32 %v1057, %v1271
        %v1273 = vsub.f32 1.0, %v1272
        %v1274 = vmul.f32 %v1271, %v1273
        %v1275 = vadd.f32 %v1271, %v1274
        %vm1276 = vweird.f32 %v1057
        %vm1277 = vweird.f32 %v1271
        %vm1278 = vmor %vm1276, %vm1277
        %v1279 = vsel %vm1278, %v1271, %v1275
        %v1280 = vand.u32 2147483647, %v1057
        %vm1281 = vcmp.eq.f32.partialorder %v1280, 8.507059e+37
        %v1282 = vand.u32 %v1057, 2147483648
        %v1283 = vor.u32 1.1754944e-38, %v1282
        %v1284 = vsel %vm1281, %v1283, %v1279
        %v1285 = vmul.f32 1.0, %v1284
        %v1286 = vrcp.pop %v1058
        %v1287 = vmul.f32 %v1058, %v1286
        %v1288 = vsub.f32 1.0, %v1287
        %v1289 = vmul.f32 %v1286, %v1288
        %v1290 = vadd.f32 %v1286, %v1289
        %vm1291 = vweird.f32 %v1058
        %vm1292 = vweird.f32 %v1286
        %vm1293 = vmor %vm1291, %vm1292
        %v1294 = vsel %vm1293, %v1286, %v1290
        %v1295 = vand.u32 2147483647, %v1058
        %vm1296 = vcmp.eq.f32.partialorder %v1295, 8.507059e+37
        %v1297 = vand.u32 %v1058, 2147483648
        %v1298 = vor.u32 1.1754944e-38, %v1297
        %v1299 = vsel %vm1296, %v1298, %v1294
        %v1300 = vmul.f32 1.0, %v1299
        %v1301 = vrcp.pop %v1059
        %v1302 = vmul.f32 %v1059, %v1301
        %v1303 = vsub.f32 1.0, %v1302
        %v1304 = vmul.f32 %v1301, %v1303
        %v1305 = vadd.f32 %v1301, %v1304
        %vm1306 = vweird.f32 %v1059
        %vm1307 = vweird.f32 %v1301
        %vm1308 = vmor %vm1306, %vm1307
        %v1309 = vsel %vm1308, %v1301, %v1305
        %v1310 = vand.u32 2147483647, %v1059
        %vm1311 = vcmp.eq.f32.partialorder %v1310, 8.507059e+37
        %v1312 = vand.u32 %v1059, 2147483648
        %v1313 = vor.u32 1.1754944e-38, %v1312
        %v1314 = vsel %vm1311, %v1313, %v1309
        %v1315 = vmul.f32 1.0, %v1314
        %v1316 = vrcp.pop %v1060
        %v1317 = vmul.f32 %v1060, %v1316
        %v1318 = vsub.f32 1.0, %v1317
        %v1319 = vmul.f32 %v1316, %v1318
        %v1320 = vadd.f32 %v1316, %v1319
        %vm1321 = vweird.f32 %v1060
        %vm1322 = vweird.f32 %v1316
        %vm1323 = vmor %vm1321, %vm1322
        %v1324 = vsel %vm1323, %v1316, %v1320
        %v1325 = vand.u32 2147483647, %v1060
        %vm1326 = vcmp.eq.f32.partialorder %v1325, 8.507059e+37
        %v1327 = vand.u32 %v1060, 2147483648
        %v1328 = vor.u32 1.1754944e-38, %v1327
        %v1329 = vsel %vm1326, %v1328, %v1324
        %v1330 = vmul.f32 1.0, %v1329
        %v1331 = vrcp.pop %v1061
        %v1332 = vmul.f32 %v1061, %v1331
        %v1333 = vsub.f32 1.0, %v1332
        %v1334 = vmul.f32 %v1331, %v1333
        %v1335 = vadd.f32 %v1331, %v1334
        %vm1336 = vweird.f32 %v1061
        %vm1337 = vweird.f32 %v1331
        %vm1338 = vmor %vm1336, %vm1337
        %v1339 = vsel %vm1338, %v1331, %v1335
        %v1340 = vand.u32 2147483647, %v1061
        %vm1341 = vcmp.eq.f32.partialorder %v1340, 8.507059e+37
        %v1342 = vand.u32 %v1061, 2147483648
        %v1343 = vor.u32 1.1754944e-38, %v1342
        %v1344 = vsel %vm1341, %v1343, %v1339
        %v1345 = vmul.f32 1.0, %v1344
        %v1346 = vrcp.pop %v1062
        %v1347 = vmul.f32 %v1062, %v1346
        %v1348 = vsub.f32 1.0, %v1347
        %v1349 = vmul.f32 %v1346, %v1348
        %v1350 = vadd.f32 %v1346, %v1349
        %vm1351 = vweird.f32 %v1062
        %vm1352 = vweird.f32 %v1346
        %vm1353 = vmor %vm1351, %vm1352
        %v1354 = vsel %vm1353, %v1346, %v1350
        %v1355 = vand.u32 2147483647, %v1062
        %vm1356 = vcmp.eq.f32.partialorder %v1355, 8.507059e+37
        %v1357 = vand.u32 %v1062, 2147483648
        %v1358 = vor.u32 1.1754944e-38, %v1357
        %v1359 = vsel %vm1356, %v1358, %v1354
        %v1360 = vmul.f32 1.0, %v1359
        %v1361 = vrcp.pop %v1063
        %v1362 = vmul.f32 %v1063, %v1361
        %v1363 = vsub.f32 1.0, %v1362
        %v1364 = vmul.f32 %v1361, %v1363
        %v1365 = vadd.f32 %v1361, %v1364
        %vm1366 = vweird.f32 %v1063
        %vm1367 = vweird.f32 %v1361
        %vm1368 = vmor %vm1366, %vm1367
        %v1369 = vsel %vm1368, %v1361, %v1365
        %v1370 = vand.u32 2147483647, %v1063
        %vm1371 = vcmp.eq.f32.partialorder %v1370, 8.507059e+37
        %v1372 = vand.u32 %v1063, 2147483648
        %v1373 = vor.u32 1.1754944e-38, %v1372
        %v1374 = vsel %vm1371, %v1373, %v1369
        %v1375 = vmul.f32 1.0, %v1374
        %v1376 = vrcp.pop %v1064
        %v1377 = vmul.f32 %v1064, %v1376
        %v1378 = vsub.f32 1.0, %v1377
        %v1379 = vmul.f32 %v1376, %v1378
        %v1380 = vadd.f32 %v1376, %v1379
        %vm1381 = vweird.f32 %v1064
        %vm1382 = vweird.f32 %v1376
        %vm1383 = vmor %vm1381, %vm1382
        %v1384 = vsel %vm1383, %v1376, %v1380
        %v1385 = vand.u32 2147483647, %v1064
        %vm1386 = vcmp.eq.f32.partialorder %v1385, 8.507059e+37
        %v1387 = vand.u32 %v1064, 2147483648
        %v1388 = vor.u32 1.1754944e-38, %v1387
        %v1389 = vsel %vm1386, %v1388, %v1384
        %v1390 = vmul.f32 1.0, %v1389
        %v1391 = vrcp.pop %v1065
        %v1392 = vmul.f32 %v1065, %v1391
        %v1393 = vsub.f32 1.0, %v1392
        %v1394 = vmul.f32 %v1391, %v1393
        %v1395 = vadd.f32 %v1391, %v1394
        %vm1396 = vweird.f32 %v1065
        %vm1397 = vweird.f32 %v1391
        %vm1398 = vmor %vm1396, %vm1397
        %v1399 = vsel %vm1398, %v1391, %v1395
        %v1400 = vand.u32 2147483647, %v1065
        %vm1401 = vcmp.eq.f32.partialorder %v1400, 8.507059e+37
        %v1402 = vand.u32 %v1065, 2147483648
        %v1403 = vor.u32 1.1754944e-38, %v1402
        %v1404 = vsel %vm1401, %v1403, %v1399
        %v1405 = vmul.f32 1.0, %v1404
        %v1406 = vrcp.pop %v1066
        %v1407 = vmul.f32 %v1066, %v1406
        %v1408 = vsub.f32 1.0, %v1407
        %v1409 = vmul.f32 %v1406, %v1408
        %v1410 = vadd.f32 %v1406, %v1409
        %vm1411 = vweird.f32 %v1066
        %vm1412 = vweird.f32 %v1406
        %vm1413 = vmor %vm1411, %vm1412
        %v1414 = vsel %vm1413, %v1406, %v1410
        %v1415 = vand.u32 2147483647, %v1066
        %vm1416 = vcmp.eq.f32.partialorder %v1415, 8.507059e+37
        %v1417 = vand.u32 %v1066, 2147483648
        %v1418 = vor.u32 1.1754944e-38, %v1417
        %v1419 = vsel %vm1416, %v1418, %v1414
        %v1420 = vmul.f32 1.0, %v1419
        %v1421 = vrcp.pop %v1067
        %v1422 = vmul.f32 %v1067, %v1421
        %v1423 = vsub.f32 1.0, %v1422
        %v1424 = vmul.f32 %v1421, %v1423
        %v1425 = vadd.f32 %v1421, %v1424
        %vm1426 = vweird.f32 %v1067
        %vm1427 = vweird.f32 %v1421
        %vm1428 = vmor %vm1426, %vm1427
        %v1429 = vsel %vm1428, %v1421, %v1425
        %v1430 = vand.u32 2147483647, %v1067
        %vm1431 = vcmp.eq.f32.partialorder %v1430, 8.507059e+37
        %v1432 = vand.u32 %v1067, 2147483648
        %v1433 = vor.u32 1.1754944e-38, %v1432
        %v1434 = vsel %vm1431, %v1433, %v1429
        %v1435 = vmul.f32 1.0, %v1434
        %v1436 = vrcp.pop %v1068
        %v1437 = vmul.f32 %v1068, %v1436
        %v1438 = vsub.f32 1.0, %v1437
        %v1439 = vmul.f32 %v1436, %v1438
        %v1440 = vadd.f32 %v1436, %v1439
        %vm1441 = vweird.f32 %v1068
        %vm1442 = vweird.f32 %v1436
        %vm1443 = vmor %vm1441, %vm1442
        %v1444 = vsel %vm1443, %v1436, %v1440
        %v1445 = vand.u32 2147483647, %v1068
        %vm1446 = vcmp.eq.f32.partialorder %v1445, 8.507059e+37
        %v1447 = vand.u32 %v1068, 2147483648
        %v1448 = vor.u32 1.1754944e-38, %v1447
        %v1449 = vsel %vm1446, %v1448, %v1444
        %v1450 = vmul.f32 1.0, %v1449
        %v1451 = vrcp.pop %v1069
        %v1452 = vmul.f32 %v1069, %v1451
        %v1453 = vsub.f32 1.0, %v1452
        %v1454 = vmul.f32 %v1451, %v1453
        %v1455 = vadd.f32 %v1451, %v1454
        %vm1456 = vweird.f32 %v1069
        %vm1457 = vweird.f32 %v1451
        %vm1458 = vmor %vm1456, %vm1457
        %v1459 = vsel %vm1458, %v1451, %v1455
        %v1460 = vand.u32 2147483647, %v1069
        %vm1461 = vcmp.eq.f32.partialorder %v1460, 8.507059e+37
        %v1462 = vand.u32 %v1069, 2147483648
        %v1463 = vor.u32 1.1754944e-38, %v1462
        %v1464 = vsel %vm1461, %v1463, %v1459
        %v1465 = vmul.f32 1.0, %v1464
        %v1466 = vrcp.pop %v1070
        %v1467 = vmul.f32 %v1070, %v1466
        %v1468 = vsub.f32 1.0, %v1467
        %v1469 = vmul.f32 %v1466, %v1468
        %v1470 = vadd.f32 %v1466, %v1469
        %vm1471 = vweird.f32 %v1070
        %vm1472 = vweird.f32 %v1466
        %vm1473 = vmor %vm1471, %vm1472
        %v1474 = vsel %vm1473, %v1466, %v1470
        %v1475 = vand.u32 2147483647, %v1070
        %vm1476 = vcmp.eq.f32.partialorder %v1475, 8.507059e+37
        %v1477 = vand.u32 %v1070, 2147483648
        %v1478 = vor.u32 1.1754944e-38, %v1477
        %v1479 = vsel %vm1476, %v1478, %v1474
        %v1480 = vmul.f32 1.0, %v1479
        %v1481 = vrcp.pop %v1071
        %v1482 = vmul.f32 %v1071, %v1481
        %v1483 = vsub.f32 1.0, %v1482
        %v1484 = vmul.f32 %v1481, %v1483
        %v1485 = vadd.f32 %v1481, %v1484
        %vm1486 = vweird.f32 %v1071
        %vm1487 = vweird.f32 %v1481
        %vm1488 = vmor %vm1486, %vm1487
        %v1489 = vsel %vm1488, %v1481, %v1485
        %v1490 = vand.u32 2147483647, %v1071
        %vm1491 = vcmp.eq.f32.partialorder %v1490, 8.507059e+37
        %v1492 = vand.u32 %v1071, 2147483648
        %v1493 = vor.u32 1.1754944e-38, %v1492
        %v1494 = vsel %vm1491, %v1493, %v1489
        %v1495 = vmul.f32 1.0, %v1494
        %v1496 = vrcp.pop %v1072
        %v1497 = vmul.f32 %v1072, %v1496
        %v1498 = vsub.f32 1.0, %v1497
        %v1499 = vmul.f32 %v1496, %v1498
        %v1500 = vadd.f32 %v1496, %v1499
        %vm1501 = vweird.f32 %v1072
        %vm1502 = vweird.f32 %v1496
        %vm1503 = vmor %vm1501, %vm1502
        %v1504 = vsel %vm1503, %v1496, %v1500
        %v1505 = vand.u32 2147483647, %v1072
        %vm1506 = vcmp.eq.f32.partialorder %v1505, 8.507059e+37
        %v1507 = vand.u32 %v1072, 2147483648
        %v1508 = vor.u32 1.1754944e-38, %v1507
        %v1509 = vsel %vm1506, %v1508, %v1504
        %v1510 = vmul.f32 1.0, %v1509
        %v1511 = vrcp.pop %v1073
        %v1512 = vmul.f32 %v1073, %v1511
        %v1513 = vsub.f32 1.0, %v1512
        %v1514 = vmul.f32 %v1511, %v1513
        %v1515 = vadd.f32 %v1511, %v1514
        %vm1516 = vweird.f32 %v1073
        %vm1517 = vweird.f32 %v1511
        %vm1518 = vmor %vm1516, %vm1517
        %v1519 = vsel %vm1518, %v1511, %v1515
        %v1520 = vand.u32 2147483647, %v1073
        %vm1521 = vcmp.eq.f32.partialorder %v1520, 8.507059e+37
        %v1522 = vand.u32 %v1073, 2147483648
        %v1523 = vor.u32 1.1754944e-38, %v1522
        %v1524 = vsel %vm1521, %v1523, %v1519
        %v1525 = vmul.f32 1.0, %v1524
        %v1526 = vrcp.pop %v1074
        %v1527 = vmul.f32 %v1074, %v1526
        %v1528 = vsub.f32 1.0, %v1527
        %v1529 = vmul.f32 %v1526, %v1528
        %v1530 = vadd.f32 %v1526, %v1529
        %vm1531 = vweird.f32 %v1074
        %vm1532 = vweird.f32 %v1526
        %vm1533 = vmor %vm1531, %vm1532
        %v1534 = vsel %vm1533, %v1526, %v1530
        %v1535 = vand.u32 2147483647, %v1074
        %vm1536 = vcmp.eq.f32.partialorder %v1535, 8.507059e+37
        %v1537 = vand.u32 %v1074, 2147483648
        %v1538 = vor.u32 1.1754944e-38, %v1537
        %v1539 = vsel %vm1536, %v1538, %v1534
        %v1540 = vmul.f32 1.0, %v1539
        %v1541 = vrcp.pop %v1075
        %v1542 = vmul.f32 %v1075, %v1541
        %v1543 = vsub.f32 1.0, %v1542
        %v1544 = vmul.f32 %v1541, %v1543
        %v1545 = vadd.f32 %v1541, %v1544
        %vm1546 = vweird.f32 %v1075
        %vm1547 = vweird.f32 %v1541
        %vm1548 = vmor %vm1546, %vm1547
        %v1549 = vsel %vm1548, %v1541, %v1545
        %v1550 = vand.u32 2147483647, %v1075
        %vm1551 = vcmp.eq.f32.partialorder %v1550, 8.507059e+37
        %v1552 = vand.u32 %v1075, 2147483648
        %v1553 = vor.u32 1.1754944e-38, %v1552
        %v1554 = vsel %vm1551, %v1553, %v1549
        %v1555 = vmul.f32 1.0, %v1554
        %v1556 = vmul.f32 %v916, %v1090
        %v1557 = vmul.f32 %v917, %v1105
        %v1558 = vmul.f32 %v918, %v1120
        %v1559 = vmul.f32 %v919, %v1135
        %v1560 = vmul.f32 %v920, %v1150
        %v1561 = vmul.f32 %v921, %v1165
        %v1562 = vmul.f32 %v922, %v1180
        %v1563 = vmul.f32 %v923, %v1195
        %v1564 = vmul.f32 %v924, %v1210
        %v1565 = vmul.f32 %v925, %v1225
        %v1566 = vmul.f32 %v926, %v1240
        %v1567 = vmul.f32 %v927, %v1255
        %v1568 = vmul.f32 %v928, %v1270
        %v1569 = vmul.f32 %v929, %v1285
        %v1570 = vmul.f32 %v930, %v1300
        %v1571 = vmul.f32 %v931, %v1315
        %v1572 = vmul.f32 %v932, %v1330
        %v1573 = vmul.f32 %v933, %v1345
        %v1574 = vmul.f32 %v934, %v1360
        %v1575 = vmul.f32 %v935, %v1375
        %v1576 = vmul.f32 %v936, %v1390
        %v1577 = vmul.f32 %v937, %v1405
        %v1578 = vmul.f32 %v938, %v1420
        %v1579 = vmul.f32 %v939, %v1435
        %v1580 = vmul.f32 %v940, %v1450
        %v1581 = vmul.f32 %v941, %v1465
        %v1582 = vmul.f32 %v942, %v1480
        %v1583 = vmul.f32 %v943, %v1495
        %v1584 = vmul.f32 %v944, %v1510
        %v1585 = vmul.f32 %v945, %v1525
        %v1586 = vmul.f32 %v946, %v1540
        %v1587 = vmul.f32 %v947, %v1555
        %v1588 = vpack.c.bf16 %v1557, %v1556
        %v1589 = vpack.c.bf16 %v1559, %v1558
        %v1590 = vpack.c.bf16 %v1561, %v1560
        %v1591 = vpack.c.bf16 %v1563, %v1562
        %v1592 = vpack.c.bf16 %v1565, %v1564
        %v1593 = vpack.c.bf16 %v1567, %v1566
        %v1594 = vpack.c.bf16 %v1569, %v1568
        %v1595 = vpack.c.bf16 %v1571, %v1570
        %v1596 = vpack.c.bf16 %v1573, %v1572
        %v1597 = vpack.c.bf16 %v1575, %v1574
        %v1598 = vpack.c.bf16 %v1577, %v1576
        %v1599 = vpack.c.bf16 %v1579, %v1578
        %v1600 = vpack.c.bf16 %v1581, %v1580
        %v1601 = vpack.c.bf16 %v1583, %v1582
        %v1602 = vpack.c.bf16 %v1585, %v1584
        %v1603 = vpack.c.bf16 %v1587, %v1586
        %v1604 = vld [vmem:[%s3] sm:$0x1]
        %s1605 = sld [smem:[#allocation2]]
        %v1606 = vstv %s1605
        %1607 = vmatpush.bf16.xpose.msra.mxu0 %v1595
        %1608 = vmatpush.bf16.xpose.msra.mxu0 %v1594
        %1609 = vmatpush.bf16.xpose.msra.mxu0 %v1593
        %1610 = vmatpush.bf16.xpose.msra.mxu0 %v1592
        %1611 = vmatpush.bf16.xpose.msra.mxu0 %v1591
        %1612 = vmatpush.bf16.xpose.msra.mxu0 %v1590
        %1613 = vmatpush.bf16.xpose.msra.mxu0 %v1589
        %1614 = vmatpush.bf16.xpose.msra.mxu0 %v1588
        %1615 = vmatmul.bf16.gmra.mxu0 %v1604
        %v1616 = vpop.f32.mrf.mxu0
        %v1617 = vadd.f32 %v1606, %v1616
        %v1618 = vpop.f32.mrf.mxu0
        %1619 = vdwg.mxu0
        %1620 = vmatpush.bf16.xpose.msra.mxu0 %v1603
        %1621 = vmatpush.bf16.xpose.msra.mxu0 %v1602
        %1622 = vmatpush.bf16.xpose.msra.mxu0 %v1601
        %1623 = vmatpush.bf16.xpose.msra.mxu0 %v1600
        %1624 = vmatpush.bf16.xpose.msra.mxu0 %v1599
        %1625 = vmatpush.bf16.xpose.msra.mxu0 %v1598
        %1626 = vmatpush.bf16.xpose.msra.mxu0 %v1597
        %1627 = vmatpush.bf16.xpose.msra.mxu0 %v1596
        %1628 = vmatmul.bf16.gmra.mxu0 %v1604
        %v1629 = vpop.f32.mrf.mxu0
        %v1630 = vadd.f32 %v1606, %v1629
        %v1631 = vpop.f32.mrf.mxu0
        %1632 = vdwg.mxu0
        %v1635 = vrot.slane %v1630, 7
        %vm1636 = vcmask 1040384
        %v1637 = vsel %vm1636, %v1617, %v1635
        %v1639 = vlaneseq
        %vm1640 = vcmp.ge.s32.totalorder %v1639, 0
        %vm1641 = vcmp.lt.s32.totalorder %v1639, 256
        %vm1642 = vmand %vm1640, %vm1641
        %1643 = vst.msk [vmem:[%s263] sm:$0x3] %vm1642, %v1637
        %s1644 = sand.u32 %s142, 1
        %s1645 = scalar_lea.sflag [#allocation5], %s1644
        %s1646 = sand.u32 %s142, 1
        %s1647 = smul.addr %s1646, 2
        %s1648 = scalar_lea.vmem [#allocation8], %s1647
        // Predicated region
        $region49: #{tpu_custom_call.1} parent=39 // pred_check
          %p1649 = pneg %p152
        $region50: #{tpu_custom_call.1} parent=39 // pred_check_branch
          %1651 = sbr.rel (%p1649) target = $region52
        $region51: #{tpu_custom_call.1} parent=39 // pred_region
          %s1652 = smul.u32 2, %s24
          %1654 = vsyncadd %s1645, 0
          %s1655 = scalar_lea.hbm %s5, %s1652
          %s1657 = sshll.u32 %s1648, 4
          %s1658 = int_to_ptr.vmem [resolvable:$true] %s1657
          %s1659 = sshll.u32 %s1655, 4
          %s1660 = int_to_ptr.hbm [resolvable:$true] %s1659
          %1662 = dma.vmem_to_hbm [thread:$0]  %s1658, 32, %s1660, %s1645
        $region52: #{tpu_custom_call.1} parent=39 // pred_fallthru
          _
      $region40: #{tpu_custom_call.1} parent=5 // pred_fallthru
        _
      %p1663 = scmp.le.s32.totalorder 2, %s19
      // Predicated region
      $region53: #{tpu_custom_call.1} parent=5 // pred_check
        %p1664 = pneg %p1663
      $region54: #{tpu_custom_call.1} parent=5 // pred_check_branch
        %1666 = sbr.rel (%p1664) target = $region56
      $region55: #{tpu_custom_call.1} parent=5 // pred_region
        %s1667 = ssub.s32 %s19, 2
        // Predicated region
        $region57: #{tpu_custom_call.1} parent=55 // pred_check
          %p1668 = pneg %p158
        $region58: #{tpu_custom_call.1} parent=55 // pred_check_branch
          %1670 = sbr.rel (%p1668) target = $region60
        $region59: #{tpu_custom_call.1} parent=55 // pred_region
          %s1671 = sand.u32 %s143, 1
          %s1672 = scalar_lea.sflag [#allocation5], %s1671
          %s1673 = sand.u32 %s143, 1
          %s1674 = smul.addr %s1673, 2
          %s1675 = scalar_lea.vmem [#allocation8], %s1674
          %1677 = dma.done %s1672, 32
        $region60: #{tpu_custom_call.1} parent=55 // pred_fallthru
          _
      $region56: #{tpu_custom_call.1} parent=5 // pred_fallthru
        _
    $region6: #{tpu_custom_call.1} parent=1 // loop_footer
      %s23 = sadd.s32 1, %s19
    $region7: #{tpu_custom_call.1} parent=1 // loop_footer_branch
      %18 = sbr.rel target = $region3
    $region8: #{tpu_custom_call.1} parent=1 // loop_exit
      _
    %1678 = vsyncpa [#allocation4], 1
    %s1679 = scalar_lea.sflag [#allocation4], 1
    %1680 = vsyncpa %s1679, 1
    %1681 = vsyncpa [#allocation7], 1
    %1682 = vsyncpa [#allocation5], 1
    %s1683 = scalar_lea.sflag [#allocation5], 1
    %1684 = vsyncpa %s1683, 1

</llo_original>
